<compile_context>
chip_gen: v6e
topology: v6e:2x2x1
jax: 0.10.0
libtpu: 0.0.40
codegen_flags: <defaults>
</compile_context>

<pallas_src>
import functools
from dataclasses import dataclass

import numpy as np
import jax
import jax.numpy as jnp
from jax.experimental import pallas as pl
from jax.experimental.pallas import tpu as pltpu


@dataclass(frozen=True)
class FlowDecoderConfig:
    hidden_channels: int
    kernel_size: int
    dilation_rate: int
    n_blocks: int
    n_layers: int
    p_dropout: float = 0.0
    n_split: int = 4
    n_sqz: int = 2
    sigmoid_scale: bool = False


# ----------------------------------------------------------------------------
# Fused flow-stack Pallas kernel (grid = (batch, n_blocks); z resident across blocks)
# ----------------------------------------------------------------------------
def _flow_kernel(lens_ref,                       # SMEM (B,) int32 (scalar prefetch)
                 x_ref, g_ref,                   # (T,C) f32, (1,G) f32
                 mt_ref, bmt_ref,                # fused ActNorm+InvConv (f32)
                 ws_ref, bs_ref,                 # coupling start 1x1
                 wc_ref, bc_ref,                 # speaker-cond 1x1
                 win_ref, bin_ref,               # WN in_layers (im2col-flattened)
                 wrs_ref, brs_ref,               # WN res/skip, layers 0..L-2
                 wre_ref, bre_ref,               # WN skip, last layer (H,H)
                 we_ref, be_ref,                 # coupling end 1x1
                 z_ref, ld_ref,                  # outputs (resident across block axis)
                 hpad_ref,                       # VMEM scratch (zero-padded h)
                 *, hidden, n_layers, kernel_size, dilation_rate,
                 pad_off, c_half, sigmoid_scale):
    H = hidden
    b = pl.program_id(0)
    k = pl.program_id(1)
    t_len = x_ref.shape[0]

    # Block 0: seed the resident activation tile and the logdet accumulator.
    @pl.when(k == 0)
    def _init():
        z_ref[...] = x_ref[...]
        ld_ref[...] = jnp.zeros_like(ld_ref)

    # Prefix (sequence-length) mask rebuilt in-kernel from the prefetched lengths.
    mask = (jax.lax.broadcasted_iota(jnp.int32, (t_len, 1), 0)
            < lens_ref[b]).astype(jnp.float32)         # (T, 1)

    x = z_ref[...]                                     # current flow state (T, C) f32

    # ---- ActNorm + InvConvNear fused into a single f32 1x1 matmul + bias ----
    y = (jnp.dot(x, mt_ref[...], preferred_element_type=jnp.float32)
         + bmt_ref[...]) * mask                        # (T, C)
    y0 = y[:, :c_half]
    y1 = y[:, c_half:]

    # ---- CouplingBlock: start conv (bf16 MXU, f32 accumulate) ----
    h = (jnp.dot(y0.astype(jnp.bfloat16), ws_ref[...],
                 preferred_element_type=jnp.float32) + bs_ref[...]) * mask   # (T, H)

    # Speaker conditioning: g has a length-1 time axis -> one vector per batch element.
    g_all = (jnp.dot(g_ref[...].astype(jnp.bfloat16), wc_ref[...],
                     preferred_element_type=jnp.float32) + bc_ref[...])      # (1, 2*H*L)

    # Zero the padded scratch (halo regions must be zero; center is overwritten per layer).
    hpad_ref[...] = jnp.zeros(hpad_ref.shape, jnp.float32)

    output = None
    for i in range(n_layers):
        dil = dilation_rate ** i
        pad = dil * (kernel_size - 1) // 2
        hpad_ref[pl.ds(pad_off, t_len), :] = h         # pad_off is 8-aligned (static)

        # im2col: the K dilated, time-shifted taps side by side -> one wide MXU matmul
        taps = [hpad_ref[pl.ds(pad_off - pad + kk * dil, t_len), :]
                for kk in range(kernel_size)]
        col = jnp.concatenate(taps, axis=-1).astype(jnp.bfloat16)            # (T, K*H)

        x_act = (jnp.dot(col, win_ref[i], preferred_element_type=jnp.float32)
                 + bin_ref[i] + g_all[:, i * 2 * H:(i + 1) * 2 * H])         # (T, 2H)
        # TODO(synk): nn.Dropout(p_dropout) omitted -> eval-mode (identity) semantics.
        acts = jnp.tanh(x_act[:, :H]) * jax.nn.sigmoid(x_act[:, H:])
        acts16 = acts.astype(jnp.bfloat16)

        if i < n_layers - 1:
            res_skip = (jnp.dot(acts16, wrs_ref[i],
                                preferred_element_type=jnp.float32) + brs_ref[i])
            h = (h + res_skip[:, :H]) * mask
            skip = res_skip[:, H:]
        else:
            # Last WN layer: true (H, H) skip projection, no zero-padded half.
            skip = (jnp.dot(acts16, wre_ref[...],
                            preferred_element_type=jnp.float32) + bre_ref[...])
        output = skip if output is None else output + skip

    output = output * mask
    out = (jnp.dot(output.astype(jnp.bfloat16), we_ref[...],
                   preferred_element_type=jnp.float32) + be_ref[...])        # (T, C)

    m_shift = out[:, :c_half]
    logs = out[:, c_half:]
    if sigmoid_scale:
        logs = jnp.log(1e-6 + jax.nn.sigmoid(logs + 2.0))

    # Affine update and logdet kept in f32.
    z1 = (m_shift + jnp.exp(logs) * y1) * mask
    z_ref[...] = jnp.concatenate([y0, z1], axis=-1)
    ld_ref[...] = ld_ref[...] + jnp.sum(logs * mask).reshape(1, 1, 1)


def make_flow_call(batch, t, c, gin, cfg):
    H, L, K = cfg.hidden_channels, cfg.n_layers, cfg.kernel_size
    NB = cfg.n_blocks
    dil_rate = int(cfg.dilation_rate)
    pad_max = max(dil_rate ** i * (K - 1) // 2 for i in range(L))
    pad_off = max(((pad_max + 7) // 8) * 8, 8)        # 8-aligned write offset into hpad
    c_half = c // 2
    l_mid = max(L - 1, 1)

    kernel = functools.partial(
        _flow_kernel, hidden=H, n_layers=L, kernel_size=K,
        dilation_rate=dil_rate, pad_off=pad_off, c_half=c_half,
        sigmoid_scale=cfg.sigmoid_scale)

    def xspec(shape):            # per-batch block, constant across the flow-block axis
        nd = len(shape)
        return pl.BlockSpec((None,) + shape,
                            lambda b, k, lens, _nd=nd: (b,) + (0,) * _nd)

    def wspec(shape):            # per-flow-block weight (streamed along the block axis)
        nd = len(shape)
        return pl.BlockSpec((None,) + shape,
                            lambda b, k, lens, _nd=nd: (k,) + (0,) * _nd)

    return pl.pallas_call(
        kernel,
        out_shape=(jax.ShapeDtypeStruct((batch, t, c), jnp.float32),
                   jax.ShapeDtypeStruct((batch, 1, 1), jnp.float32)),
        grid_spec=pltpu.PrefetchScalarGridSpec(
            num_scalar_prefetch=1,                      # sequence lengths in SMEM
            grid=(batch, NB),
            in_specs=[
                xspec((t, c)),                          # x (B,T,C) f32
                xspec((1, gin)),                        # g (B,1,G) f32
                wspec((c, c)),                          # fused actnorm+invconv matrix f32
                wspec((1, c)),                          # fused bias f32
                wspec((c_half, H)),                     # start weight bf16
                wspec((1, H)),                          # start bias f32
                wspec((gin, 2 * H * L)),                # cond weight bf16
                wspec((1, 2 * H * L)),                  # cond bias f32
                wspec((L, K * H, 2 * H)),               # WN in_layers (im2col) bf16
                wspec((L, 1, 2 * H)),                   # WN in_layers bias f32
                wspec((l_mid, H, 2 * H)),               # WN res/skip weights bf16
                wspec((l_mid, 1, 2 * H)),               # WN res/skip biases f32
                wspec((H, H)),                          # WN last-layer skip weight bf16
                wspec((1, H)),                          # WN last-layer skip bias f32
                wspec((H, c)),                          # end weight bf16
                wspec((1, c)),                          # end bias f32
            ],
            out_specs=[xspec((t, c)),                   # z resident across block axis
                       pl.BlockSpec((1, 1, 1), lambda b, k, lens: (b, 0, 0))],
            scratch_shapes=[pltpu.VMEM((2 * pad_off + t, H), jnp.float32)]),
        compiler_params=pltpu.CompilerParams(
            dimension_semantics=("parallel", "arbitrary"),   # batch parallel, blocks serial
            vmem_limit_bytes=32 * 1024 * 1024),
    )


# ----------------------------------------------------------------------------
# Host-side glue: channel squeeze, InvConv folding, parameter prep
# ----------------------------------------------------------------------------
def channel_squeeze(x, x_mask, n_sqz):
    b, c, t = x.shape
    t = (t // n_sqz) * n_sqz
    x = x[:, :, :t]
    x_sqz = x.reshape(b, c, t // n_sqz, n_sqz)
    x_sqz = jnp.transpose(x_sqz, (0, 3, 1, 2)).reshape(b, c * n_sqz, t // n_sqz)
    x_mask = x_mask[:, :, n_sqz - 1::n_sqz]
    return x_sqz * x_mask, x_mask


def channel_unsqueeze(x, x_mask, n_sqz):
    b, c, t = x.shape
    x_unsqz = x.reshape(b, n_sqz, c // n_sqz, t)
    x_unsqz = jnp.transpose(x_unsqz, (0, 2, 3, 1)).reshape(b, c // n_sqz, t * n_sqz)
    x_mask = jnp.repeat(x_mask[:, :, :, None], n_sqz, axis=3).reshape(b, 1, t * n_sqz)
    return x_unsqz * x_mask, x_mask


def invconv_channel_matrix(w, c, n_split):
    """Fold InvConvNear's view/permute/grouped-1x1-conv into one CxC channel matrix.

    NOTE: verified against a pure-JAX re-derivation; should be cross-checked against
    torch's InvConvNear once when porting real checkpoints."""
    ns2 = n_split // 2
    cg = c // n_split
    m = np.zeros((c, c), dtype=np.float32)
    for c_out in range(c):
        a1, r1 = divmod(c_out, cg * ns2)
        j1, m1 = divmod(r1, ns2)
        s1 = a1 * ns2 + m1
        for s2 in range(n_split):
            a2, m2 = divmod(s2, ns2)
            c_in = a2 * cg * ns2 + j1 * ns2 + m2
            m[c_out, c_in] = w[s1, s2]
    return m


def init_params(key, cfg, in_channels, gin_channels):
    c = in_channels * cfg.n_sqz
    c2 = c // 2
    H, L, K = cfg.hidden_channels, cfg.n_layers, cfg.kernel_size
    n_mid = max(L - 1, 1)

    def rnd(k, shape, scale=0.1):
        return (scale * jax.random.normal(k, shape)).astype(jnp.float32)

    blocks = []
    for bi in range(cfg.n_blocks):
        key, *ks = jax.random.split(key, 15)
        # ActNorm (torch init is zeros; small values used so the math is exercised)
        actnorm = dict(logs=rnd(ks[0], (1, c)), bias=rnd(ks[1], (1, c)))
        # InvConvNear: orthogonal n_split x n_split from QR, det forced positive
        rng = np.random.default_rng(1234 + bi)
        w = np.linalg.qr(rng.normal(size=(cfg.n_split, cfg.n_split)))[0].astype(np.float32)
        if np.linalg.det(w) < 0:
            w[:, 0] = -w[:, 0]
        invconv = dict(mt=jnp.asarray(invconv_channel_matrix(w, c, cfg.n_split).T),
                       logdet_w=float(np.linalg.slogdet(w)[1]))
        # CouplingBlock + WN (weight_norm folded into plain effective weights).
        # Last WN layer has only `hidden` res/skip channels -> separate (H, H) weight.
        coupling = dict(
            ws=rnd(ks[2], (c2, H)), bs=rnd(ks[3], (1, H), 0.01),
            wc=rnd(ks[4], (gin_channels, 2 * H * L)), bc=rnd(ks[5], (1, 2 * H * L), 0.01),
            win=rnd(ks[6], (L, K, H, 2 * H)), bin=rnd(ks[7], (L, 1, 2 * H), 0.01),
            wrs=rnd(ks[8], (n_mid, H, 2 * H)), brs=rnd(ks[9], (n_mid, 1, 2 * H), 0.01),
            wre=rnd(ks[10], (H, H)), bre=rnd(ks[11], (1, H), 0.01),
            # NOTE: torch zero-inits `end`; small nonzero values so the flow is non-trivial
            we=rnd(ks[12], (H, c), 0.05), be=rnd(ks[13], (1, c), 0.01))
        blocks.append(dict(actnorm=actnorm, invconv=invconv, coupling=coupling))
    return blocks


def prep_block_params(p, cfg):
    """Fold ActNorm into the InvConv matrix (f32) and cast large weights to bf16."""
    an, ic, cp = p['actnorm'], p['invconv'], p['coupling']
    L, K, H = cfg.n_layers, cfg.kernel_size, cfg.hidden_channels
    s = jnp.exp(an['logs'])                               # (1, C) f32
    mt_eff = s.reshape(-1, 1) * ic['mt']                  # diag(exp(logs)) @ mt, f32
    bmt = jnp.dot(an['bias'], ic['mt'])                   # bias @ mt, f32
    bf = lambda a: a.astype(jnp.bfloat16)
    return dict(
        mt=mt_eff, bmt=bmt,
        ws=bf(cp['ws']), bs=cp['bs'],
        wc=bf(cp['wc']), bc=cp['bc'],
        win=bf(cp['win'].reshape(L, K * H, 2 * H)), bin=cp['bin'],
        wrs=bf(cp['wrs']), brs=cp['brs'],
        wre=bf(cp['wre']), bre=cp['bre'],
        we=bf(cp['we']), be=cp['be'])


def prep_all_block_params(blocks, cfg):
    """Stack per-block folded params along a leading n_blocks axis."""
    per = [prep_block_params(p, cfg) for p in blocks]
    return {k: jnp.stack([p[k] for p in per], axis=0) for k in per[0]}


# ----------------------------------------------------------------------------
# Pure-JAX reference (same mixed precision as the kernel, used for verification)
# ----------------------------------------------------------------------------
def _mm(a, w):
    return jnp.einsum('...i,io->...o', a.astype(jnp.bfloat16), w.astype(jnp.bfloat16),
                      preferred_element_type=jnp.float32)


def _ref_coupling(x, mask, g, p, cfg, c):
    c2, H, L, K = c // 2, cfg.hidden_channels, cfg.n_layers, cfg.kernel_size
    b, t, _ = x.shape
    x0, x1 = x[..., :c2], x[..., c2:]
    h = (_mm(x0, p['ws']) + p['bs']) * mask
    g_all = _mm(g[:, None, :], p['wc']) + p['bc']        # (B, 1, 2*H*L)
    output = jnp.zeros((b, t, H), jnp.float32)
    for i in range(L):
        dil = int(cfg.dilation_rate) ** i
        pad = dil * (K - 1) // 2
        hp = jnp.pad(h, ((0, 0), (pad, pad), (0, 0)))
        acc = jnp.zeros((b, t, 2 * H), jnp.float32) + p['bin'][i]
        for k in range(K):
            acc = acc + _mm(hp[:, k * dil:k * dil + t, :], p['win'][i, k])
        x_act = acc + g_all[:, :, i * 2 * H:(i + 1) * 2 * H]
        acts = jnp.tanh(x_act[..., :H]) * jax.nn.sigmoid(x_act[..., H:])
        if i < L - 1:
            res_skip = _mm(acts, p['wrs'][i]) + p['brs'][i]
            h = (h + res_skip[..., :H]) * mask
            output = output + res_skip[..., H:]
        else:
            output = output + _mm(acts, p['wre']) + p['bre']
    output = output * mask
    out = _mm(output, p['we']) + p['be']
    m_shift, logs = out[..., :c2], out[..., c2:]
    if cfg.sigmoid_scale:
        logs = jnp.log(1e-6 + jax.nn.sigmoid(logs + 2.0))
    z1 = (m_shift + jnp.exp(logs) * x1) * mask
    return jnp.concatenate([x0, z1], axis=-1), jnp.sum(logs * mask, axis=(1, 2))


# ----------------------------------------------------------------------------
# Forward (forward/non-reverse direction of the PyTorch FlowDecoder)
# ----------------------------------------------------------------------------
def flow_decoder_forward(blocks, cfg, x, x_mask, g, use_pallas=True):
    """x: (B, in_channels, T) NCT, x_mask: (B, 1, T) prefix mask, g: (B, gin).
    Returns (z in NCT layout, logdet (B,))."""
    if cfg.n_sqz > 1:
        x, x_mask = channel_squeeze(x, x_mask, cfg.n_sqz)
    b, c, t = x.shape
    xb = jnp.transpose(x, (0, 2, 1))            # (B, T, C)
    mb = jnp.transpose(x_mask, (0, 2, 1))       # (B, T, 1)
    x_len = jnp.sum(mb, axis=(1, 2))            # (B,) f32
    lens_i32 = x_len.astype(jnp.int32)          # prefix-mask lengths for the kernel

    # Host-side parameter-only logdet terms (ActNorm + InvConvNear), kept in f32.
    logdet_tot = jnp.zeros((b,), jnp.float32)
    for p in blocks:
        logdet_tot = logdet_tot + jnp.sum(p['actnorm']['logs']) * x_len
        logdet_tot = logdet_tot + p['invconv']['logdet_w'] * (c / cfg.n_split) * x_len

    if use_pallas:
        kp = prep_all_block_params(blocks, cfg)
        flow_f = make_flow_call(b, t, c, g.shape[1], cfg)
        g3 = g[:, None, :]                      # (B, 1, gin)
        xb, ld = flow_f(lens_i32, xb, g3, kp['mt'], kp['bmt'],
                        kp['ws'], kp['bs'], kp['wc'], kp['bc'],
                        kp['win'], kp['bin'], kp['wrs'], kp['brs'],
                        kp['wre'], kp['bre'], kp['we'], kp['be'])
        logdet_tot = logdet_tot + ld[:, 0, 0]
    else:
        for p in blocks:
            an, ic, cp = p['actnorm'], p['invconv'], p['coupling']
            xb = (an['bias'] + jnp.exp(an['logs']) * xb) * mb            # ActNorm (f32)
            xb = jnp.einsum('btc,cd->btd', xb, ic['mt']) * mb            # InvConvNear (f32)
            xb, ld = _ref_coupling(xb, mb, g, cp, cfg, c)                # CouplingBlock
            logdet_tot = logdet_tot + ld

    x_out = jnp.transpose(xb, (0, 2, 1))        # back to NCT
    if cfg.n_sqz > 1:
        x_out, x_mask = channel_unsqueeze(x_out, x_mask, cfg.n_sqz)
    return x_out, logdet_tot


if __name__ == "__main__":
    cfg = FlowDecoderConfig(hidden_channels=32, kernel_size=5, dilation_rate=1,
                            n_blocks=2, n_layers=2, p_dropout=0.05,
                            n_split=4, n_sqz=2, sigmoid_scale=False)
    in_channels = 8      # pre-squeeze feature channels (small synthetic "mel" size)
    gin_channels = 16    # x-vector speaker-embedding channels
    B, T_raw = 2, 16

    key = jax.random.PRNGKey(0)
    kx, kg, kp = jax.random.split(key, 3)
    x = jax.random.normal(kx, (B, in_channels, T_raw), dtype=jnp.float32)
    g = jax.random.normal(kg, (B, gin_channels), dtype=jnp.float32)
    lengths = jnp.array([16, 12], dtype=jnp.int32)
    x_mask = (jnp.arange(T_raw)[None, None, :] < lengths[:, None, None]).astype(jnp.float32)

    blocks = init_params(kp, cfg, in_channels, gin_channels)

    fwd_pallas = jax.jit(lambda bl, xi, mi, gi:
                         flow_decoder_forward(bl, cfg, xi, mi, gi, use_pallas=True))
    fwd_ref = jax.jit(lambda bl, xi, mi, gi:
                      flow_decoder_forward(bl, cfg, xi, mi, gi, use_pallas=False))

    z, logdet = fwd_pallas(blocks, x, x_mask, g)
    z, logdet = jax.block_until_ready((z, logdet))

    # Pure-JAX reference with identical parameters / mixed precision for verification.
    z_ref, logdet_ref = fwd_ref(blocks, x, x_mask, g)
    z_ref, logdet_ref = jax.block_until_ready((z_ref, logdet_ref))

    np.testing.assert_allclose(np.asarray(z), np.asarray(z_ref), rtol=2e-2, atol=1e-2)
    np.testing.assert_allclose(np.asarray(logdet), np.asarray(logdet_ref),
                               rtol=2e-2, atol=1e-2)

    print("KERNEL_OK")
</pallas_src>

<mosaic_0001>
module attributes {stable_mosaic.version = 11 : i64} {
  func.func @_flow_kernel(%arg0: i32, %arg1: i32, %arg2: memref<2xi32, #tpu.memory_space<smem>>, %arg3: memref<1x8x16xf32, #tpu.memory_space<vmem>>, %arg4: memref<1x1x16xf32, #tpu.memory_space<vmem>>, %arg5: memref<1x16x16xf32, #tpu.memory_space<vmem>>, %arg6: memref<1x1x16xf32, #tpu.memory_space<vmem>>, %arg7: memref<1x8x32xbf16, #tpu.memory_space<vmem>>, %arg8: memref<1x1x32xf32, #tpu.memory_space<vmem>>, %arg9: memref<1x16x128xbf16, #tpu.memory_space<vmem>>, %arg10: memref<1x1x128xf32, #tpu.memory_space<vmem>>, %arg11: memref<1x2x160x64xbf16, #tpu.memory_space<vmem>>, %arg12: memref<1x2x1x64xf32, #tpu.memory_space<vmem>>, %arg13: memref<1x1x32x64xbf16, #tpu.memory_space<vmem>>, %arg14: memref<1x1x1x64xf32, #tpu.memory_space<vmem>>, %arg15: memref<1x32x32xbf16, #tpu.memory_space<vmem>>, %arg16: memref<1x1x32xf32, #tpu.memory_space<vmem>>, %arg17: memref<1x32x16xbf16, #tpu.memory_space<vmem>>, %arg18: memref<1x1x16xf32, #tpu.memory_space<vmem>>, %arg19: memref<1x8x16xf32, #tpu.memory_space<vmem>>, %arg20: memref<1x1x1xf32, #tpu.memory_space<vmem>>, %arg21: memref<24x32xf32, #tpu.memory_space<vmem>>) attributes {dimension_semantics = [#tpu.dimension_semantics<parallel>, #tpu.dimension_semantics<arbitrary>], iteration_bounds = array<i64: 2, 2>, scalar_prefetch = 1 : i64, scratch_operands = 1 : i64, tpu.core_type = #tpu.core_type<tc>, window_params = [{transform_indices = @transform_0, window_bounds = array<i64: 1, 8, 16>}, {transform_indices = @transform_1, window_bounds = array<i64: 1, 1, 16>}, {transform_indices = @transform_2, window_bounds = array<i64: 1, 16, 16>}, {transform_indices = @transform_3, window_bounds = array<i64: 1, 1, 16>}, {transform_indices = @transform_4, window_bounds = array<i64: 1, 8, 32>}, {transform_indices = @transform_5, window_bounds = array<i64: 1, 1, 32>}, {transform_indices = @transform_6, window_bounds = array<i64: 1, 16, 128>}, {transform_indices = @transform_7, window_bounds = array<i64: 1, 1, 128>}, {transform_indices = @transform_8, window_bounds = array<i64: 1, 2, 160, 64>}, {transform_indices = @transform_9, window_bounds = array<i64: 1, 2, 1, 64>}, {transform_indices = @transform_10, window_bounds = array<i64: 1, 1, 32, 64>}, {transform_indices = @transform_11, window_bounds = array<i64: 1, 1, 1, 64>}, {transform_indices = @transform_12, window_bounds = array<i64: 1, 32, 32>}, {transform_indices = @transform_13, window_bounds = array<i64: 1, 1, 32>}, {transform_indices = @transform_14, window_bounds = array<i64: 1, 32, 16>}, {transform_indices = @transform_15, window_bounds = array<i64: 1, 1, 16>}, {transform_indices = @transform_16, window_bounds = array<i64: 1, 8, 16>}, {transform_indices = @transform_17, window_bounds = array<i64: 1, 1, 1>}]} {
    %c0_i32 = arith.constant 0 : i32
    %0 = arith.cmpi eq, %arg1, %c0_i32 : i32
    %1 = arith.extui %0 : i1 to i32
    %c0_i32_0 = arith.constant 0 : i32
    %2 = arith.cmpi ne, %1, %c0_i32_0 : i32
    scf.if %2 {
      %c0_100 = arith.constant 0 : index
      %c0_101 = arith.constant 0 : index
      %c0_102 = arith.constant 0 : index
      %151 = vector.load %arg3[%c0_100, %c0_101, %c0_102] : memref<1x8x16xf32, #tpu.memory_space<vmem>>, vector<1x8x16xf32>
      %152 = vector.shape_cast %151 : vector<1x8x16xf32> to vector<8x16xf32>
      %c0_103 = arith.constant 0 : index
      %c0_104 = arith.constant 0 : index
      %c0_105 = arith.constant 0 : index
      %153 = vector.load %arg19[%c0_103, %c0_104, %c0_105] : memref<1x8x16xf32, #tpu.memory_space<vmem>>, vector<1x8x16xf32>
      %154 = vector.shape_cast %153 : vector<1x8x16xf32> to vector<8x16xf32>
      %155 = vector.shape_cast %152 : vector<8x16xf32> to vector<1x8x16xf32>
      tpu.vector_store %arg19[%c0_103, %c0_104, %c0_105], %155 {strides = array<i32>} : memref<1x8x16xf32, #tpu.memory_space<vmem>>, vector<1x8x16xf32>,
      %cst_106 = arith.constant 0.000000e+00 : f32
      %156 = vector.broadcast %cst_106 : f32 to vector<1x1x1xf32>
      %c0_107 = arith.constant 0 : index
      %c0_108 = arith.constant 0 : index
      %c0_109 = arith.constant 0 : index
      %157 = vector.load %arg20[%c0_107, %c0_108, %c0_109] : memref<1x1x1xf32, #tpu.memory_space<vmem>>, vector<1x1x1xf32>
      tpu.vector_store %arg20[%c0_107, %c0_108, %c0_109], %156 {strides = array<i32>} : memref<1x1x1xf32, #tpu.memory_space<vmem>>, vector<1x1x1xf32>,
    } else {
    }
    %3 = tpu.iota {dimensions = array<i32: 0>} : vector<8x1xi32>
    %4 = arith.index_cast %arg0 : i32 to index
    %5 = memref.load %arg2[%4] : memref<2xi32, #tpu.memory_space<smem>>
    %6 = vector.broadcast %5 : i32 to vector<8x1xi32>
    %7 = arith.cmpi slt, %3, %6 : vector<8x1xi32>
    %8 = arith.extui %7 : vector<8x1xi1> to vector<8x1xi32>
    %9 = arith.sitofp %8 : vector<8x1xi32> to vector<8x1xf32>
    %c0 = arith.constant 0 : index
    %c0_1 = arith.constant 0 : index
    %c0_2 = arith.constant 0 : index
    %10 = vector.load %arg19[%c0, %c0_1, %c0_2] : memref<1x8x16xf32, #tpu.memory_space<vmem>>, vector<1x8x16xf32>
    %11 = vector.shape_cast %10 : vector<1x8x16xf32> to vector<8x16xf32>
    %c0_3 = arith.constant 0 : index
    %c0_4 = arith.constant 0 : index
    %c0_5 = arith.constant 0 : index
    %12 = vector.load %arg5[%c0_3, %c0_4, %c0_5] : memref<1x16x16xf32, #tpu.memory_space<vmem>>, vector<1x16x16xf32>
    %13 = vector.shape_cast %12 : vector<1x16x16xf32> to vector<16x16xf32>
    %cst = arith.constant dense<0.000000e+00> : vector<8x16xf32>
    %14 = tpu.matmul %11, %13, %cst {dimension_numbers = #tpu.dot_dimension_numbers<[1], [0], [0], [1], [0, 0, 1, 1], [], []>} : vector<8x16xf32>, vector<16x16xf32>, vector<8x16xf32> -> vector<8x16xf32>
    %c0_6 = arith.constant 0 : index
    %c0_7 = arith.constant 0 : index
    %c0_8 = arith.constant 0 : index
    %15 = vector.load %arg6[%c0_6, %c0_7, %c0_8] : memref<1x1x16xf32, #tpu.memory_space<vmem>>, vector<1x1x16xf32>
    %16 = vector.shape_cast %15 : vector<1x1x16xf32> to vector<1x16xf32>
    %17 = vector.broadcast %16 : vector<1x16xf32> to vector<8x16xf32>
    %18 = arith.addf %14, %17 : vector<8x16xf32>
    %19 = vector.broadcast %9 : vector<8x1xf32> to vector<8x16xf32>
    %20 = arith.mulf %18, %19 : vector<8x16xf32>
    %21 = vector.extract_strided_slice %20 {offsets = [0, 0], sizes = [8, 8], strides = [1, 1]} : vector<8x16xf32> to vector<8x8xf32>
    %22 = vector.extract_strided_slice %20 {offsets = [0, 8], sizes = [8, 8], strides = [1, 1]} : vector<8x16xf32> to vector<8x8xf32>
    %23 = arith.truncf %21 : vector<8x8xf32> to vector<8x8xbf16>
    %c0_9 = arith.constant 0 : index
    %c0_10 = arith.constant 0 : index
    %c0_11 = arith.constant 0 : index
    %24 = vector.load %arg7[%c0_9, %c0_10, %c0_11] : memref<1x8x32xbf16, #tpu.memory_space<vmem>>, vector<1x8x32xbf16>
    %25 = vector.shape_cast %24 : vector<1x8x32xbf16> to vector<8x32xbf16>
    %cst_12 = arith.constant dense<0.000000e+00> : vector<8x32xf32>
    %26 = tpu.matmul %23, %25, %cst_12 {dimension_numbers = #tpu.dot_dimension_numbers<[1], [0], [0], [1], [0, 0, 1, 1], [], []>} : vector<8x8xbf16>, vector<8x32xbf16>, vector<8x32xf32> -> vector<8x32xf32>
    %c0_13 = arith.constant 0 : index
    %c0_14 = arith.constant 0 : index
    %c0_15 = arith.constant 0 : index
    %27 = vector.load %arg8[%c0_13, %c0_14, %c0_15] : memref<1x1x32xf32, #tpu.memory_space<vmem>>, vector<1x1x32xf32>
    %28 = vector.shape_cast %27 : vector<1x1x32xf32> to vector<1x32xf32>
    %29 = vector.broadcast %28 : vector<1x32xf32> to vector<8x32xf32>
    %30 = arith.addf %26, %29 : vector<8x32xf32>
    %31 = vector.broadcast %9 : vector<8x1xf32> to vector<8x32xf32>
    %32 = arith.mulf %30, %31 : vector<8x32xf32>
    %c0_16 = arith.constant 0 : index
    %c0_17 = arith.constant 0 : index
    %c0_18 = arith.constant 0 : index
    %33 = vector.load %arg4[%c0_16, %c0_17, %c0_18] : memref<1x1x16xf32, #tpu.memory_space<vmem>>, vector<1x1x16xf32>
    %34 = vector.shape_cast %33 : vector<1x1x16xf32> to vector<1x16xf32>
    %35 = arith.truncf %34 : vector<1x16xf32> to vector<1x16xbf16>
    %c0_19 = arith.constant 0 : index
    %c0_20 = arith.constant 0 : index
    %c0_21 = arith.constant 0 : index
    %36 = vector.load %arg9[%c0_19, %c0_20, %c0_21] : memref<1x16x128xbf16, #tpu.memory_space<vmem>>, vector<1x16x128xbf16>
    %37 = vector.shape_cast %36 : vector<1x16x128xbf16> to vector<16x128xbf16>
    %cst_22 = arith.constant dense<0.000000e+00> : vector<1x128xf32>
    %38 = tpu.matmul %35, %37, %cst_22 {dimension_numbers = #tpu.dot_dimension_numbers<[1], [0], [0], [1], [0, 0, 1, 1], [], []>} : vector<1x16xbf16>, vector<16x128xbf16>, vector<1x128xf32> -> vector<1x128xf32>
    %c0_23 = arith.constant 0 : index
    %c0_24 = arith.constant 0 : index
    %c0_25 = arith.constant 0 : index
    %39 = vector.load %arg10[%c0_23, %c0_24, %c0_25] : memref<1x1x128xf32, #tpu.memory_space<vmem>>, vector<1x1x128xf32>
    %40 = vector.shape_cast %39 : vector<1x1x128xf32> to vector<1x128xf32>
    %41 = arith.addf %38, %40 : vector<1x128xf32>
    %cst_26 = arith.constant 0.000000e+00 : f32
    %42 = vector.broadcast %cst_26 : f32 to vector<24x32xf32>
    %c0_27 = arith.constant 0 : index
    %c0_28 = arith.constant 0 : index
    %43 = vector.load %arg21[%c0_27, %c0_28] : memref<24x32xf32, #tpu.memory_space<vmem>>, vector<24x32xf32>
    tpu.vector_store %arg21[%c0_27, %c0_28], %42 {strides = array<i32>} : memref<24x32xf32, #tpu.memory_space<vmem>>, vector<24x32xf32>,
    %c8 = arith.constant 8 : index
    %c0_29 = arith.constant 0 : index
    %44 = vector.load %arg21[%c8, %c0_29] : memref<24x32xf32, #tpu.memory_space<vmem>>, vector<8x32xf32>
    tpu.vector_store %arg21[%c8, %c0_29], %32 {strides = array<i32>} : memref<24x32xf32, #tpu.memory_space<vmem>>, vector<8x32xf32>,
    %c6 = arith.constant 6 : index
    %c0_30 = arith.constant 0 : index
    %45 = vector.load %arg21[%c6, %c0_30] : memref<24x32xf32, #tpu.memory_space<vmem>>, vector<8x32xf32>
    %c7 = arith.constant 7 : index
    %c0_31 = arith.constant 0 : index
    %46 = vector.load %arg21[%c7, %c0_31] : memref<24x32xf32, #tpu.memory_space<vmem>>, vector<8x32xf32>
    %c8_32 = arith.constant 8 : index
    %c0_33 = arith.constant 0 : index
    %47 = vector.load %arg21[%c8_32, %c0_33] : memref<24x32xf32, #tpu.memory_space<vmem>>, vector<8x32xf32>
    %c9 = arith.constant 9 : index
    %c0_34 = arith.constant 0 : index
    %48 = vector.load %arg21[%c9, %c0_34] : memref<24x32xf32, #tpu.memory_space<vmem>>, vector<8x32xf32>
    %c10 = arith.constant 10 : index
    %c0_35 = arith.constant 0 : index
    %49 = vector.load %arg21[%c10, %c0_35] : memref<24x32xf32, #tpu.memory_space<vmem>>, vector<8x32xf32>
    %50 = tpu.concatenate %45, %46, %47, %48, %49 in 1 : vector<8x32xf32>, vector<8x32xf32>, vector<8x32xf32>, vector<8x32xf32>, vector<8x32xf32> -> vector<8x160xf32>
    %51 = arith.truncf %50 : vector<8x160xf32> to vector<8x160xbf16>
    %c0_36 = arith.constant 0 : index
    %c0_37 = arith.constant 0 : index
    %c0_38 = arith.constant 0 : index
    %c0_39 = arith.constant 0 : index
    %52 = vector.load %arg11[%c0_36, %c0_37, %c0_38, %c0_39] : memref<1x2x160x64xbf16, #tpu.memory_space<vmem>>, vector<1x1x160x64xbf16>
    %53 = vector.shape_cast %52 : vector<1x1x160x64xbf16> to vector<160x64xbf16>
    %cst_40 = arith.constant dense<0.000000e+00> : vector<8x64xf32>
    %54 = tpu.matmul %51, %53, %cst_40 {dimension_numbers = #tpu.dot_dimension_numbers<[1], [0], [0], [1], [0, 0, 1, 1], [], []>} : vector<8x160xbf16>, vector<160x64xbf16>, vector<8x64xf32> -> vector<8x64xf32>
    %c0_41 = arith.constant 0 : index
    %c0_42 = arith.constant 0 : index
    %c0_43 = arith.constant 0 : index
    %c0_44 = arith.constant 0 : index
    %55 = vector.load %arg12[%c0_41, %c0_42, %c0_43, %c0_44] : memref<1x2x1x64xf32, #tpu.memory_space<vmem>>, vector<1x1x1x64xf32>
    %56 = vector.shape_cast %55 : vector<1x1x1x64xf32> to vector<1x64xf32>
    %57 = vector.broadcast %56 : vector<1x64xf32> to vector<8x64xf32>
    %58 = arith.addf %54, %57 : vector<8x64xf32>
    %59 = vector.extract_strided_slice %41 {offsets = [0, 0], sizes = [1, 64], strides = [1, 1]} : vector<1x128xf32> to vector<1x64xf32>
    %60 = vector.broadcast %59 : vector<1x64xf32> to vector<8x64xf32>
    %61 = arith.addf %58, %60 : vector<8x64xf32>
    %62 = vector.extract_strided_slice %61 {offsets = [0, 0], sizes = [8, 32], strides = [1, 1]} : vector<8x64xf32> to vector<8x32xf32>
    %63 = math.tanh %62 : vector<8x32xf32>
    %64 = vector.extract_strided_slice %61 {offsets = [0, 32], sizes = [8, 32], strides = [1, 1]} : vector<8x64xf32> to vector<8x32xf32>
    %65 = arith.negf %64 : vector<8x32xf32>
    %66 = math.exp %65 : vector<8x32xf32>
    %cst_45 = arith.constant 1.000000e+00 : f32
    %67 = vector.broadcast %cst_45 : f32 to vector<8x32xf32>
    %68 = arith.addf %67, %66 : vector<8x32xf32>
    %69 = arith.divf %67, %68 : vector<8x32xf32>
    %70 = arith.mulf %63, %69 : vector<8x32xf32>
    %71 = arith.truncf %70 : vector<8x32xf32> to vector<8x32xbf16>
    %c0_46 = arith.constant 0 : index
    %c0_47 = arith.constant 0 : index
    %c0_48 = arith.constant 0 : index
    %c0_49 = arith.constant 0 : index
    %72 = vector.load %arg13[%c0_46, %c0_47, %c0_48, %c0_49] : memref<1x1x32x64xbf16, #tpu.memory_space<vmem>>, vector<1x1x32x64xbf16>
    %73 = vector.shape_cast %72 : vector<1x1x32x64xbf16> to vector<32x64xbf16>
    %cst_50 = arith.constant dense<0.000000e+00> : vector<8x64xf32>
    %74 = tpu.matmul %71, %73, %cst_50 {dimension_numbers = #tpu.dot_dimension_numbers<[1], [0], [0], [1], [0, 0, 1, 1], [], []>} : vector<8x32xbf16>, vector<32x64xbf16>, vector<8x64xf32> -> vector<8x64xf32>
    %c0_51 = arith.constant 0 : index
    %c0_52 = arith.constant 0 : index
    %c0_53 = arith.constant 0 : index
    %c0_54 = arith.constant 0 : index
    %75 = vector.load %arg14[%c0_51, %c0_52, %c0_53, %c0_54] : memref<1x1x1x64xf32, #tpu.memory_space<vmem>>, vector<1x1x1x64xf32>
    %76 = vector.shape_cast %75 : vector<1x1x1x64xf32> to vector<1x64xf32>
    %77 = vector.broadcast %76 : vector<1x64xf32> to vector<8x64xf32>
    %78 = arith.addf %74, %77 : vector<8x64xf32>
    %79 = vector.extract_strided_slice %78 {offsets = [0, 0], sizes = [8, 32], strides = [1, 1]} : vector<8x64xf32> to vector<8x32xf32>
    %80 = arith.addf %32, %79 : vector<8x32xf32>
    %81 = vector.broadcast %9 : vector<8x1xf32> to vector<8x32xf32>
    %82 = arith.mulf %80, %81 : vector<8x32xf32>
    %83 = vector.extract_strided_slice %78 {offsets = [0, 32], sizes = [8, 32], strides = [1, 1]} : vector<8x64xf32> to vector<8x32xf32>
    %c8_55 = arith.constant 8 : index
    %c0_56 = arith.constant 0 : index
    %84 = vector.load %arg21[%c8_55, %c0_56] : memref<24x32xf32, #tpu.memory_space<vmem>>, vector<8x32xf32>
    tpu.vector_store %arg21[%c8_55, %c0_56], %82 {strides = array<i32>} : memref<24x32xf32, #tpu.memory_space<vmem>>, vector<8x32xf32>,
    %c6_57 = arith.constant 6 : index
    %c0_58 = arith.constant 0 : index
    %85 = vector.load %arg21[%c6_57, %c0_58] : memref<24x32xf32, #tpu.memory_space<vmem>>, vector<8x32xf32>
    %c7_59 = arith.constant 7 : index
    %c0_60 = arith.constant 0 : index
    %86 = vector.load %arg21[%c7_59, %c0_60] : memref<24x32xf32, #tpu.memory_space<vmem>>, vector<8x32xf32>
    %c8_61 = arith.constant 8 : index
    %c0_62 = arith.constant 0 : index
    %87 = vector.load %arg21[%c8_61, %c0_62] : memref<24x32xf32, #tpu.memory_space<vmem>>, vector<8x32xf32>
    %c9_63 = arith.constant 9 : index
    %c0_64 = arith.constant 0 : index
    %88 = vector.load %arg21[%c9_63, %c0_64] : memref<24x32xf32, #tpu.memory_space<vmem>>, vector<8x32xf32>
    %c10_65 = arith.constant 10 : index
    %c0_66 = arith.constant 0 : index
    %89 = vector.load %arg21[%c10_65, %c0_66] : memref<24x32xf32, #tpu.memory_space<vmem>>, vector<8x32xf32>
    %90 = tpu.concatenate %85, %86, %87, %88, %89 in 1 : vector<8x32xf32>, vector<8x32xf32>, vector<8x32xf32>, vector<8x32xf32>, vector<8x32xf32> -> vector<8x160xf32>
    %91 = arith.truncf %90 : vector<8x160xf32> to vector<8x160xbf16>
    %c0_67 = arith.constant 0 : index
    %c1 = arith.constant 1 : index
    %c0_68 = arith.constant 0 : index
    %c0_69 = arith.constant 0 : index
    %92 = vector.load %arg11[%c0_67, %c1, %c0_68, %c0_69] : memref<1x2x160x64xbf16, #tpu.memory_space<vmem>>, vector<1x1x160x64xbf16>
    %93 = vector.shape_cast %92 : vector<1x1x160x64xbf16> to vector<160x64xbf16>
    %cst_70 = arith.constant dense<0.000000e+00> : vector<8x64xf32>
    %94 = tpu.matmul %91, %93, %cst_70 {dimension_numbers = #tpu.dot_dimension_numbers<[1], [0], [0], [1], [0, 0, 1, 1], [], []>} : vector<8x160xbf16>, vector<160x64xbf16>, vector<8x64xf32> -> vector<8x64xf32>
    %c0_71 = arith.constant 0 : index
    %c1_72 = arith.constant 1 : index
    %c0_73 = arith.constant 0 : index
    %c0_74 = arith.constant 0 : index
    %95 = vector.load %arg12[%c0_71, %c1_72, %c0_73, %c0_74] : memref<1x2x1x64xf32, #tpu.memory_space<vmem>>, vector<1x1x1x64xf32>
    %96 = vector.shape_cast %95 : vector<1x1x1x64xf32> to vector<1x64xf32>
    %97 = vector.broadcast %96 : vector<1x64xf32> to vector<8x64xf32>
    %98 = arith.addf %94, %97 : vector<8x64xf32>
    %99 = vector.extract_strided_slice %41 {offsets = [0, 64], sizes = [1, 64], strides = [1, 1]} : vector<1x128xf32> to vector<1x64xf32>
    %100 = vector.broadcast %99 : vector<1x64xf32> to vector<8x64xf32>
    %101 = arith.addf %98, %100 : vector<8x64xf32>
    %102 = vector.extract_strided_slice %101 {offsets = [0, 0], sizes = [8, 32], strides = [1, 1]} : vector<8x64xf32> to vector<8x32xf32>
    %103 = math.tanh %102 : vector<8x32xf32>
    %104 = vector.extract_strided_slice %101 {offsets = [0, 32], sizes = [8, 32], strides = [1, 1]} : vector<8x64xf32> to vector<8x32xf32>
    %105 = arith.negf %104 : vector<8x32xf32>
    %106 = math.exp %105 : vector<8x32xf32>
    %cst_75 = arith.constant 1.000000e+00 : f32
    %107 = vector.broadcast %cst_75 : f32 to vector<8x32xf32>
    %108 = arith.addf %107, %106 : vector<8x32xf32>
    %109 = arith.divf %107, %108 : vector<8x32xf32>
    %110 = arith.mulf %103, %109 : vector<8x32xf32>
    %111 = arith.truncf %110 : vector<8x32xf32> to vector<8x32xbf16>
    %c0_76 = arith.constant 0 : index
    %c0_77 = arith.constant 0 : index
    %c0_78 = arith.constant 0 : index
    %112 = vector.load %arg15[%c0_76, %c0_77, %c0_78] : memref<1x32x32xbf16, #tpu.memory_space<vmem>>, vector<1x32x32xbf16>
    %113 = vector.shape_cast %112 : vector<1x32x32xbf16> to vector<32x32xbf16>
    %cst_79 = arith.constant dense<0.000000e+00> : vector<8x32xf32>
    %114 = tpu.matmul %111, %113, %cst_79 {dimension_numbers = #tpu.dot_dimension_numbers<[1], [0], [0], [1], [0, 0, 1, 1], [], []>} : vector<8x32xbf16>, vector<32x32xbf16>, vector<8x32xf32> -> vector<8x32xf32>
    %c0_80 = arith.constant 0 : index
    %c0_81 = arith.constant 0 : index
    %c0_82 = arith.constant 0 : index
    %115 = vector.load %arg16[%c0_80, %c0_81, %c0_82] : memref<1x1x32xf32, #tpu.memory_space<vmem>>, vector<1x1x32xf32>
    %116 = vector.shape_cast %115 : vector<1x1x32xf32> to vector<1x32xf32>
    %117 = vector.broadcast %116 : vector<1x32xf32> to vector<8x32xf32>
    %118 = arith.addf %114, %117 : vector<8x32xf32>
    %119 = arith.addf %83, %118 : vector<8x32xf32>
    %120 = vector.broadcast %9 : vector<8x1xf32> to vector<8x32xf32>
    %121 = arith.mulf %119, %120 : vector<8x32xf32>
    %122 = arith.truncf %121 : vector<8x32xf32> to vector<8x32xbf16>
    %c0_83 = arith.constant 0 : index
    %c0_84 = arith.constant 0 : index
    %c0_85 = arith.constant 0 : index
    %123 = vector.load %arg17[%c0_83, %c0_84, %c0_85] : memref<1x32x16xbf16, #tpu.memory_space<vmem>>, vector<1x32x16xbf16>
    %124 = vector.shape_cast %123 : vector<1x32x16xbf16> to vector<32x16xbf16>
    %cst_86 = arith.constant dense<0.000000e+00> : vector<8x16xf32>
    %125 = tpu.matmul %122, %124, %cst_86 {dimension_numbers = #tpu.dot_dimension_numbers<[1], [0], [0], [1], [0, 0, 1, 1], [], []>} : vector<8x32xbf16>, vector<32x16xbf16>, vector<8x16xf32> -> vector<8x16xf32>
    %c0_87 = arith.constant 0 : index
    %c0_88 = arith.constant 0 : index
    %c0_89 = arith.constant 0 : index
    %126 = vector.load %arg18[%c0_87, %c0_88, %c0_89] : memref<1x1x16xf32, #tpu.memory_space<vmem>>, vector<1x1x16xf32>
    %127 = vector.shape_cast %126 : vector<1x1x16xf32> to vector<1x16xf32>
    %128 = vector.broadcast %127 : vector<1x16xf32> to vector<8x16xf32>
    %129 = arith.addf %125, %128 : vector<8x16xf32>
    %130 = vector.extract_strided_slice %129 {offsets = [0, 0], sizes = [8, 8], strides = [1, 1]} : vector<8x16xf32> to vector<8x8xf32>
    %131 = vector.extract_strided_slice %129 {offsets = [0, 8], sizes = [8, 8], strides = [1, 1]} : vector<8x16xf32> to vector<8x8xf32>
    %132 = math.exp %131 : vector<8x8xf32>
    %133 = arith.mulf %132, %22 : vector<8x8xf32>
    %134 = arith.addf %130, %133 : vector<8x8xf32>
    %135 = vector.broadcast %9 : vector<8x1xf32> to vector<8x8xf32>
    %136 = arith.mulf %134, %135 : vector<8x8xf32>
    %137 = tpu.concatenate %21, %136 in 1 : vector<8x8xf32>, vector<8x8xf32> -> vector<8x16xf32>
    %c0_90 = arith.constant 0 : index
    %c0_91 = arith.constant 0 : index
    %c0_92 = arith.constant 0 : index
    %138 = vector.load %arg19[%c0_90, %c0_91, %c0_92] : memref<1x8x16xf32, #tpu.memory_space<vmem>>, vector<1x8x16xf32>
    %139 = vector.shape_cast %138 : vector<1x8x16xf32> to vector<8x16xf32>
    %140 = vector.shape_cast %137 : vector<8x16xf32> to vector<1x8x16xf32>
    tpu.vector_store %arg19[%c0_90, %c0_91, %c0_92], %140 {strides = array<i32>} : memref<1x8x16xf32, #tpu.memory_space<vmem>>, vector<1x8x16xf32>,
    %c0_93 = arith.constant 0 : index
    %c0_94 = arith.constant 0 : index
    %c0_95 = arith.constant 0 : index
    %141 = vector.load %arg20[%c0_93, %c0_94, %c0_95] : memref<1x1x1xf32, #tpu.memory_space<vmem>>, vector<1x1x1xf32>
    %142 = vector.broadcast %9 : vector<8x1xf32> to vector<8x8xf32>
    %143 = arith.mulf %131, %142 : vector<8x8xf32>
    %144 = vector.shape_cast %143 : vector<8x8xf32> to vector<1x8x8xf32>
    %cst_96 = arith.constant dense<0.000000e+00> : vector<1xf32>
    %145 = vector.multi_reduction <add>, %144, %cst_96 [1, 2] : vector<1x8x8xf32> to vector<1xf32>
    %146 = vector.shape_cast %145 : vector<1xf32> to vector<1x1x1xf32>
    %147 = vector.extract %146[0, 0, 0] : f32 from vector<1x1x1xf32>
    %148 = vector.broadcast %147 : f32 to vector<1x1x1xf32>
    %149 = arith.addf %141, %148 : vector<1x1x1xf32>
    %c0_97 = arith.constant 0 : index
    %c0_98 = arith.constant 0 : index
    %c0_99 = arith.constant 0 : index
    %150 = vector.load %arg20[%c0_97, %c0_98, %c0_99] : memref<1x1x1xf32, #tpu.memory_space<vmem>>, vector<1x1x1xf32>
    tpu.vector_store %arg20[%c0_97, %c0_98, %c0_99], %149 {strides = array<i32>} : memref<1x1x1xf32, #tpu.memory_space<vmem>>, vector<1x1x1xf32>,
    return
  }
  func.func @transform_0(%arg0: i32, %arg1: i32, %arg2: memref<2xi32, #tpu.memory_space<smem>>) -> (i32, i32, i32) {
    %c0_i32 = arith.constant 0 : i32
    %c0_i32_0 = arith.constant 0 : i32
    %c0_i32_1 = arith.constant 0 : i32
    return %arg0, %c0_i32, %c0_i32_0 : i32, i32, i32
  }
  func.func @transform_1(%arg0: i32, %arg1: i32, %arg2: memref<2xi32, #tpu.memory_space<smem>>) -> (i32, i32, i32) {
    %c0_i32 = arith.constant 0 : i32
    %c0_i32_0 = arith.constant 0 : i32
    %c0_i32_1 = arith.constant 0 : i32
    return %arg0, %c0_i32, %c0_i32_0 : i32, i32, i32
  }
  func.func @transform_2(%arg0: i32, %arg1: i32, %arg2: memref<2xi32, #tpu.memory_space<smem>>) -> (i32, i32, i32) {
    %c0_i32 = arith.constant 0 : i32
    %c0_i32_0 = arith.constant 0 : i32
    %c0_i32_1 = arith.constant 0 : i32
    return %arg1, %c0_i32, %c0_i32_0 : i32, i32, i32
  }
  func.func @transform_3(%arg0: i32, %arg1: i32, %arg2: memref<2xi32, #tpu.memory_space<smem>>) -> (i32, i32, i32) {
    %c0_i32 = arith.constant 0 : i32
    %c0_i32_0 = arith.constant 0 : i32
    %c0_i32_1 = arith.constant 0 : i32
    return %arg1, %c0_i32, %c0_i32_0 : i32, i32, i32
  }
  func.func @transform_4(%arg0: i32, %arg1: i32, %arg2: memref<2xi32, #tpu.memory_space<smem>>) -> (i32, i32, i32) {
    %c0_i32 = arith.constant 0 : i32
    %c0_i32_0 = arith.constant 0 : i32
    %c0_i32_1 = arith.constant 0 : i32
    return %arg1, %c0_i32, %c0_i32_0 : i32, i32, i32
  }
  func.func @transform_5(%arg0: i32, %arg1: i32, %arg2: memref<2xi32, #tpu.memory_space<smem>>) -> (i32, i32, i32) {
    %c0_i32 = arith.constant 0 : i32
    %c0_i32_0 = arith.constant 0 : i32
    %c0_i32_1 = arith.constant 0 : i32
    return %arg1, %c0_i32, %c0_i32_0 : i32, i32, i32
  }
  func.func @transform_6(%arg0: i32, %arg1: i32, %arg2: memref<2xi32, #tpu.memory_space<smem>>) -> (i32, i32, i32) {
    %c0_i32 = arith.constant 0 : i32
    %c0_i32_0 = arith.constant 0 : i32
    %c0_i32_1 = arith.constant 0 : i32
    return %arg1, %c0_i32, %c0_i32_0 : i32, i32, i32
  }
  func.func @transform_7(%arg0: i32, %arg1: i32, %arg2: memref<2xi32, #tpu.memory_space<smem>>) -> (i32, i32, i32) {
    %c0_i32 = arith.constant 0 : i32
    %c0_i32_0 = arith.constant 0 : i32
    %c0_i32_1 = arith.constant 0 : i32
    return %arg1, %c0_i32, %c0_i32_0 : i32, i32, i32
  }
  func.func @transform_8(%arg0: i32, %arg1: i32, %arg2: memref<2xi32, #tpu.memory_space<smem>>) -> (i32, i32, i32, i32) {
    %c0_i32 = arith.constant 0 : i32
    %c0_i32_0 = arith.constant 0 : i32
    %c0_i32_1 = arith.constant 0 : i32
    %c0_i32_2 = arith.constant 0 : i32
    return %arg1, %c0_i32, %c0_i32_0, %c0_i32_1 : i32, i32, i32, i32
  }
  func.func @transform_9(%arg0: i32, %arg1: i32, %arg2: memref<2xi32, #tpu.memory_space<smem>>) -> (i32, i32, i32, i32) {
    %c0_i32 = arith.constant 0 : i32
    %c0_i32_0 = arith.constant 0 : i32
    %c0_i32_1 = arith.constant 0 : i32
    %c0_i32_2 = arith.constant 0 : i32
    return %arg1, %c0_i32, %c0_i32_0, %c0_i32_1 : i32, i32, i32, i32
  }
  func.func @transform_10(%arg0: i32, %arg1: i32, %arg2: memref<2xi32, #tpu.memory_space<smem>>) -> (i32, i32, i32, i32) {
    %c0_i32 = arith.constant 0 : i32
    %c0_i32_0 = arith.constant 0 : i32
    %c0_i32_1 = arith.constant 0 : i32
    %c0_i32_2 = arith.constant 0 : i32
    return %arg1, %c0_i32, %c0_i32_0, %c0_i32_1 : i32, i32, i32, i32
  }
  func.func @transform_11(%arg0: i32, %arg1: i32, %arg2: memref<2xi32, #tpu.memory_space<smem>>) -> (i32, i32, i32, i32) {
    %c0_i32 = arith.constant 0 : i32
    %c0_i32_0 = arith.constant 0 : i32
    %c0_i32_1 = arith.constant 0 : i32
    %c0_i32_2 = arith.constant 0 : i32
    return %arg1, %c0_i32, %c0_i32_0, %c0_i32_1 : i32, i32, i32, i32
  }
  func.func @transform_12(%arg0: i32, %arg1: i32, %arg2: memref<2xi32, #tpu.memory_space<smem>>) -> (i32, i32, i32) {
    %c0_i32 = arith.constant 0 : i32
    %c0_i32_0 = arith.constant 0 : i32
    %c0_i32_1 = arith.constant 0 : i32
    return %arg1, %c0_i32, %c0_i32_0 : i32, i32, i32
  }
  func.func @transform_13(%arg0: i32, %arg1: i32, %arg2: memref<2xi32, #tpu.memory_space<smem>>) -> (i32, i32, i32) {
    %c0_i32 = arith.constant 0 : i32
    %c0_i32_0 = arith.constant 0 : i32
    %c0_i32_1 = arith.constant 0 : i32
    return %arg1, %c0_i32, %c0_i32_0 : i32, i32, i32
  }
  func.func @transform_14(%arg0: i32, %arg1: i32, %arg2: memref<2xi32, #tpu.memory_space<smem>>) -> (i32, i32, i32) {
    %c0_i32 = arith.constant 0 : i32
    %c0_i32_0 = arith.constant 0 : i32
    %c0_i32_1 = arith.constant 0 : i32
    return %arg1, %c0_i32, %c0_i32_0 : i32, i32, i32
  }
  func.func @transform_15(%arg0: i32, %arg1: i32, %arg2: memref<2xi32, #tpu.memory_space<smem>>) -> (i32, i32, i32) {
    %c0_i32 = arith.constant 0 : i32
    %c0_i32_0 = arith.constant 0 : i32
    %c0_i32_1 = arith.constant 0 : i32
    return %arg1, %c0_i32, %c0_i32_0 : i32, i32, i32
  }
  func.func @transform_16(%arg0: i32, %arg1: i32, %arg2: memref<2xi32, #tpu.memory_space<smem>>) -> (i32, i32, i32) {
    %c0_i32 = arith.constant 0 : i32
    %c0_i32_0 = arith.constant 0 : i32
    %c0_i32_1 = arith.constant 0 : i32
    return %arg0, %c0_i32, %c0_i32_0 : i32, i32, i32
  }
  func.func @transform_17(%arg0: i32, %arg1: i32, %arg2: memref<2xi32, #tpu.memory_space<smem>>) -> (i32, i32, i32) {
    %c0_i32 = arith.constant 0 : i32
    %c0_i32_0 = arith.constant 0 : i32
    %c0_i32_1 = arith.constant 0 : i32
    return %arg0, %c0_i32, %c0_i32_0 : i32, i32, i32
  }
}

</mosaic_0001>

<llo_original>
// kernel: mul.49
$region0: #{mul.49}
  %s0 = inlined_call_operand.vmem [shape: f32[2,8,1,2], index: 0, kind: input, shape index: {}]
  %s1 = inlined_call_operand.vmem [shape: f32[2,16], index: 1, kind: output, shape index: {}]
  $region1: #{mul.49} parent=0
    #allocation0 [shape = 'u8[4096]{0}', space=vmem, size = 0x1000, scoped, tag = 'scoped mem for output reshape']
    %s2 = smov 3
    %v3 = vld [vmem:[%s0] ss:$8 sm:%s2]
    %vm4 = vcmask 15360
    %5 = vst.msk [vmem:[#allocation0] sm:$0x3] %vm4, %v3
    %s6 = scalar_lea.vmem %s0, 7
    %s7 = smov 3
    %v8 = vld [vmem:[%s6] ss:$8 sm:%s7]
    %9 = vrot.lane.b32.xlu0 %v8, 14
    %v10 = vpop.permute.xlu0 %9
    %vm11 = vcmask 130160
    %12 = vst.msk [vmem:[#allocation0] sm:$0x3] %vm11, %v10
    %s13 = scalar_lea.vmem %s0, 6
    %s14 = smov 3
    %v15 = vld [vmem:[%s13] ss:$8 sm:%s14]
    %16 = vrot.lane.b32.xlu0 %v15, 12
    %v17 = vpop.permute.xlu0 %16
    %vm18 = vcmask 113760
    %19 = vst.msk [vmem:[#allocation0] sm:$0x3] %vm18, %v17
    %s20 = scalar_lea.vmem %s0, 5
    %s21 = smov 3
    %v22 = vld [vmem:[%s20] ss:$8 sm:%s21]
    %23 = vrot.lane.b32.xlu0 %v22, 10
    %v24 = vpop.permute.xlu0 %23
    %vm25 = vcmask 97360
    %26 = vst.msk [vmem:[#allocation0] sm:$0x3] %vm25, %v24
    %s27 = scalar_lea.vmem %s0, 4
    %s28 = smov 3
    %v29 = vld [vmem:[%s27] ss:$8 sm:%s28]
    %30 = vrot.lane.b32.xlu0 %v29, 8
    %v31 = vpop.permute.xlu0 %30
    %vm32 = vcmask 80960
    %33 = vst.msk [vmem:[#allocation0] sm:$0x3] %vm32, %v31
    %s34 = scalar_lea.vmem %s0, 3
    %s35 = smov 3
    %v36 = vld [vmem:[%s34] ss:$8 sm:%s35]
    %37 = vrot.lane.b32.xlu0 %v36, 6
    %v38 = vpop.permute.xlu0 %37
    %vm39 = vcmask 64560
    %40 = vst.msk [vmem:[#allocation0] sm:$0x3] %vm39, %v38
    %s41 = scalar_lea.vmem %s0, 2
    %s42 = smov 3
    %v43 = vld [vmem:[%s41] ss:$8 sm:%s42]
    %44 = vrot.lane.b32.xlu0 %v43, 4
    %v45 = vpop.permute.xlu0 %44
    %vm46 = vcmask 48160
    %47 = vst.msk [vmem:[#allocation0] sm:$0x3] %vm46, %v45
    %s48 = scalar_lea.vmem %s0, 1
    %s49 = smov 3
    %v50 = vld [vmem:[%s48] ss:$8 sm:%s49]
    %51 = vrot.lane.b32.xlu0 %v50, 2
    %v52 = vpop.permute.xlu0 %51
    %vm53 = vcmask 31760
    %54 = vst.msk [vmem:[#allocation0] sm:$0x3] %vm53, %v52
    %s56 = sshll.u32 1, 2
    %s57 = ssub.s32 %s56, 1
    %v59 = vld [vmem:[#allocation0] sm:%s57]
    %s60 = sshll.u32 1, 2
    %s61 = ssub.s32 %s60, 1
    %62 = vst [vmem:[%s1] sm:%s61] %v59

// kernel: _lambda_.1
$region0: #{_lambda_.1}
  #allocation0 [shape = 'u32[]', space=smem, size = 0x4, offset = 0x4, fixed_abs, tag = 'smem constant byte address 0x4 - core index']
  #allocation1 [shape = 'u32[144,128]{1,0:T(1,128)}', space=vmem, size = 0x12000, scoped, tag = 'internal scratch']
  #allocation2 [shape = 'f32[24,32]{1,0:T(8,128)}', space=vmem, size = 0x3000, scoped, tag = 'scratch operand']
  #allocation3 [shape = 's32[1]{0}', space=sflag, size = 0x4, scoped, tag = 'scoped memory for _lambda_.1']
  #allocation4 [shape = 'u8[512]{0}', space=smem, size = 0x200, scoped, tag = 'prefetched SMEM operand 0']
  %s0 = inlined_call_operand.vmem [shape: s32[2], index: 0, kind: input, shape index: {}]
  %s1 = inlined_call_operand.vmem [shape: f32[2,8,16], index: 1, kind: input, shape index: {}]
  %s2 = inlined_call_operand.vmem [shape: f32[2,1,16], index: 2, kind: input, shape index: {}]
  %s3 = inlined_call_operand.vmem [shape: f32[2,16,16], index: 3, kind: input, shape index: {}]
  %s4 = inlined_call_operand.vmem [shape: f32[2,1,16], index: 4, kind: input, shape index: {}]
  %s5 = inlined_call_operand.vmem [shape: bf16[2,8,32], index: 5, kind: input, shape index: {}]
  %s6 = inlined_call_operand.vmem [shape: f32[2,1,32], index: 6, kind: input, shape index: {}]
  %s7 = inlined_call_operand.vmem [shape: bf16[2,16,128], index: 7, kind: input, shape index: {}]
  %s8 = inlined_call_operand.vmem [shape: f32[2,1,128], index: 8, kind: input, shape index: {}]
  %s9 = inlined_call_operand.vmem [shape: bf16[2,2,160,64], index: 9, kind: input, shape index: {}]
  %s10 = inlined_call_operand.vmem [shape: f32[2,2,1,64], index: 10, kind: input, shape index: {}]
  %s11 = inlined_call_operand.vmem [shape: bf16[2,1,32,64], index: 11, kind: input, shape index: {}]
  %s12 = inlined_call_operand.vmem [shape: f32[2,1,1,64], index: 12, kind: input, shape index: {}]
  %s13 = inlined_call_operand.vmem [shape: bf16[2,32,32], index: 13, kind: input, shape index: {}]
  %s14 = inlined_call_operand.vmem [shape: f32[2,1,32], index: 14, kind: input, shape index: {}]
  %s15 = inlined_call_operand.vmem [shape: bf16[2,32,16], index: 15, kind: input, shape index: {}]
  %s16 = inlined_call_operand.vmem [shape: f32[2,1,16], index: 16, kind: input, shape index: {}]
  %s17 = inlined_call_operand.vmem [shape: f32[2,8,16], index: 17, kind: output, shape index: {0}]
  %s18 = inlined_call_operand.vmem [shape: f32[2,1,1], index: 18, kind: output, shape index: {1}]
  %19 = xla_tuple %s17, %s18
  %s20 = sld [smem:[#allocation0]]
  $region109: #{_lambda_.1} parent=0
    _
  %s22 = ssub.s32 1, %s20
  %s23 = scalar_select 0, %s22, %s20
  %s24 = sshll.u32 %s0, 4
  %s25 = int_to_ptr.vmem [resolvable:$true] %s24
  %27 = dma.vmem_to_smem %s25, 16, [#allocation4], [#allocation3]
  %28 = dma.done [#allocation3], 16
  %29 = sfence
  loop: start=0, step=1, limit=6
  $region2: #{_lambda_.1} parent=0 // loop_pre_header
    _
  $region3: #{_lambda_.1} parent=0 // loop_header
    %s31 = sphi 0, %s35
    %p32 = scmp.ge.s32.totalorder %s31, 6
    %s38 = sphi 0, %s50
    %s39 = sphi 0, %s46
    %s40 = sphi 0, %s38
    %s41 = sphi 0, %s39
    %s42 = sphi 0, %s40
    %s43 = sphi 0, %s41
    %s53 = sphi 0, %s55
    %s56 = sphi 0, %s53
    %s57 = sphi 0, %s56
    %s73 = sphi 0, %s57
    %s79 = sphi 0, %s81
    %s82 = sphi 0, %s79
    %s83 = sphi 0, %s82
    %s99 = sphi 0, %s83
    %s105 = sphi 0, %s107
    %s108 = sphi 0, %s105
    %s109 = sphi 0, %s108
    %s125 = sphi 0, %s109
    %s131 = sphi 0, %s133
    %s134 = sphi 0, %s131
    %s135 = sphi 0, %s134
    %s151 = sphi 0, %s135
    %s157 = sphi 0, %s159
    %s160 = sphi 0, %s157
    %s161 = sphi 0, %s160
    %s177 = sphi 0, %s161
    %s183 = sphi 0, %s185
    %s186 = sphi 0, %s183
    %s187 = sphi 0, %s186
    %s203 = sphi 0, %s187
    %s209 = sphi 0, %s211
    %s212 = sphi 0, %s209
    %s213 = sphi 0, %s212
    %s229 = sphi 0, %s213
    %s235 = sphi 0, %s237
    %s238 = sphi 0, %s235
    %s239 = sphi 0, %s238
    %s255 = sphi 0, %s239
    %s261 = sphi 0, %s263
    %s264 = sphi 0, %s261
    %s265 = sphi 0, %s264
    %s281 = sphi 0, %s265
    %s287 = sphi 0, %s289
    %s290 = sphi 0, %s287
    %s291 = sphi 0, %s290
    %s307 = sphi 0, %s291
    %s313 = sphi 0, %s315
    %s316 = sphi 0, %s313
    %s317 = sphi 0, %s316
    %s333 = sphi 0, %s317
    %s339 = sphi 0, %s341
    %s342 = sphi 0, %s339
    %s343 = sphi 0, %s342
    %s359 = sphi 0, %s343
    %s365 = sphi 0, %s367
    %s368 = sphi 0, %s365
    %s369 = sphi 0, %s368
    %s385 = sphi 0, %s369
    %s391 = sphi 0, %s393
    %s394 = sphi 0, %s391
    %s395 = sphi 0, %s394
    %s411 = sphi 0, %s395
    %s417 = sphi 0, %s419
    %s420 = sphi 0, %s417
    %s421 = sphi 0, %s420
    %s437 = sphi 0, %s421
    %s443 = sphi 0, %s445
    %s446 = sphi 0, %s443
    %s447 = sphi 0, %s446
    %s463 = sphi 0, %s447
    %s469 = sphi 0, %s471
    %s472 = sphi 0, %s469
    %s473 = sphi 0, %s472
    %s489 = sphi 0, %s473
    %s495 = sphi 0, %s497
    %s498 = sphi 0, %s495
    %s499 = sphi 0, %s498
    %s515 = sphi 0, %s499
  $region4: #{_lambda_.1} parent=0 // loop_header_branch
    %34 = sbr.rel (%p32) target = $region8
  $region5: #{_lambda_.1} parent=0 // loop_body
    %s36 = ssub.s32 %s31, 1
    %s37 = ssub.s32 %s31, 2
    %s44 = sadd.s32 1, %s39
    %p45 = scmp.ge.s32.totalorder %s44, 2
    %s46 = scalar_select %p45, 0, %s44
    %s47 = sadd.s32 1, %s38
    %s48 = scalar_select %p45, %s47, %s38
    %p49 = scmp.ge.s32.totalorder %s48, 2
    %s50 = scalar_select %p49, 0, %s48
    %s51 = ssub.s32 %s38, %s50
    %p52 = scmp.eq.s32.totalorder %s51, 0
    %s54 = sadd.s32 %s53, 1
    %s55 = scalar_select %p52, %s53, %s54
    %p58 = pneg %p52
    %p59 = scmp.eq.s32.totalorder %s31, 3
    %p60 = por %p58, %p59
    %p61 = scmp.ne.s32.totalorder %s53, %s56
    %p62 = scmp.eq.s32.totalorder %s31, 0
    %p63 = por %p61, %p62
    %p64 = scmp.ne.s32.totalorder %s53, %s56
    %p65 = scmp.eq.s32.totalorder %s36, 3
    %p66 = por %p64, %p65
    %p67 = scmp.ne.s32.totalorder %s56, %s57
    %p68 = scmp.eq.s32.totalorder %s36, 0
    %p69 = por %p67, %p68
    %p70 = scmp.ne.s32.totalorder %s56, %s57
    %p71 = scmp.eq.s32.totalorder %s37, 3
    %p72 = por %p70, %p71
    %p74 = scmp.ne.s32.totalorder %s57, %s73
    %p75 = scmp.eq.s32.totalorder %s37, 0
    %p76 = por %p74, %p75
    %s77 = ssub.s32 %s38, %s50
    %p78 = scmp.eq.s32.totalorder %s77, 0
    %s80 = sadd.s32 %s79, 1
    %s81 = scalar_select %p78, %s79, %s80
    %p84 = pneg %p78
    %p85 = scmp.eq.s32.totalorder %s31, 3
    %p86 = por %p84, %p85
    %p87 = scmp.ne.s32.totalorder %s79, %s82
    %p88 = scmp.eq.s32.totalorder %s31, 0
    %p89 = por %p87, %p88
    %p90 = scmp.ne.s32.totalorder %s79, %s82
    %p91 = scmp.eq.s32.totalorder %s36, 3
    %p92 = por %p90, %p91
    %p93 = scmp.ne.s32.totalorder %s82, %s83
    %p94 = scmp.eq.s32.totalorder %s36, 0
    %p95 = por %p93, %p94
    %p96 = scmp.ne.s32.totalorder %s82, %s83
    %p97 = scmp.eq.s32.totalorder %s37, 3
    %p98 = por %p96, %p97
    %p100 = scmp.ne.s32.totalorder %s83, %s99
    %p101 = scmp.eq.s32.totalorder %s37, 0
    %p102 = por %p100, %p101
    %s103 = ssub.s32 %s39, %s46
    %p104 = scmp.eq.s32.totalorder %s103, 0
    %s106 = sadd.s32 %s105, 1
    %s107 = scalar_select %p104, %s105, %s106
    %p110 = pneg %p104
    %p111 = scmp.eq.s32.totalorder %s31, 3
    %p112 = por %p110, %p111
    %p113 = scmp.ne.s32.totalorder %s105, %s108
    %p114 = scmp.eq.s32.totalorder %s31, 0
    %p115 = por %p113, %p114
    %p116 = scmp.ne.s32.totalorder %s105, %s108
    %p117 = scmp.eq.s32.totalorder %s36, 3
    %p118 = por %p116, %p117
    %p119 = scmp.ne.s32.totalorder %s108, %s109
    %p120 = scmp.eq.s32.totalorder %s36, 0
    %p121 = por %p119, %p120
    %p122 = scmp.ne.s32.totalorder %s108, %s109
    %p123 = scmp.eq.s32.totalorder %s37, 3
    %p124 = por %p122, %p123
    %p126 = scmp.ne.s32.totalorder %s109, %s125
    %p127 = scmp.eq.s32.totalorder %s37, 0
    %p128 = por %p126, %p127
    %s129 = ssub.s32 %s39, %s46
    %p130 = scmp.eq.s32.totalorder %s129, 0
    %s132 = sadd.s32 %s131, 1
    %s133 = scalar_select %p130, %s131, %s132
    %p136 = pneg %p130
    %p137 = scmp.eq.s32.totalorder %s31, 3
    %p138 = por %p136, %p137
    %p139 = scmp.ne.s32.totalorder %s131, %s134
    %p140 = scmp.eq.s32.totalorder %s31, 0
    %p141 = por %p139, %p140
    %p142 = scmp.ne.s32.totalorder %s131, %s134
    %p143 = scmp.eq.s32.totalorder %s36, 3
    %p144 = por %p142, %p143
    %p145 = scmp.ne.s32.totalorder %s134, %s135
    %p146 = scmp.eq.s32.totalorder %s36, 0
    %p147 = por %p145, %p146
    %p148 = scmp.ne.s32.totalorder %s134, %s135
    %p149 = scmp.eq.s32.totalorder %s37, 3
    %p150 = por %p148, %p149
    %p152 = scmp.ne.s32.totalorder %s135, %s151
    %p153 = scmp.eq.s32.totalorder %s37, 0
    %p154 = por %p152, %p153
    %s155 = ssub.s32 %s39, %s46
    %p156 = scmp.eq.s32.totalorder %s155, 0
    %s158 = sadd.s32 %s157, 1
    %s159 = scalar_select %p156, %s157, %s158
    %p162 = pneg %p156
    %p163 = scmp.eq.s32.totalorder %s31, 3
    %p164 = por %p162, %p163
    %p165 = scmp.ne.s32.totalorder %s157, %s160
    %p166 = scmp.eq.s32.totalorder %s31, 0
    %p167 = por %p165, %p166
    %p168 = scmp.ne.s32.totalorder %s157, %s160
    %p169 = scmp.eq.s32.totalorder %s36, 3
    %p170 = por %p168, %p169
    %p171 = scmp.ne.s32.totalorder %s160, %s161
    %p172 = scmp.eq.s32.totalorder %s36, 0
    %p173 = por %p171, %p172
    %p174 = scmp.ne.s32.totalorder %s160, %s161
    %p175 = scmp.eq.s32.totalorder %s37, 3
    %p176 = por %p174, %p175
    %p178 = scmp.ne.s32.totalorder %s161, %s177
    %p179 = scmp.eq.s32.totalorder %s37, 0
    %p180 = por %p178, %p179
    %s181 = ssub.s32 %s39, %s46
    %p182 = scmp.eq.s32.totalorder %s181, 0
    %s184 = sadd.s32 %s183, 1
    %s185 = scalar_select %p182, %s183, %s184
    %p188 = pneg %p182
    %p189 = scmp.eq.s32.totalorder %s31, 3
    %p190 = por %p188, %p189
    %p191 = scmp.ne.s32.totalorder %s183, %s186
    %p192 = scmp.eq.s32.totalorder %s31, 0
    %p193 = por %p191, %p192
    %p194 = scmp.ne.s32.totalorder %s183, %s186
    %p195 = scmp.eq.s32.totalorder %s36, 3
    %p196 = por %p194, %p195
    %p197 = scmp.ne.s32.totalorder %s186, %s187
    %p198 = scmp.eq.s32.totalorder %s36, 0
    %p199 = por %p197, %p198
    %p200 = scmp.ne.s32.totalorder %s186, %s187
    %p201 = scmp.eq.s32.totalorder %s37, 3
    %p202 = por %p200, %p201
    %p204 = scmp.ne.s32.totalorder %s187, %s203
    %p205 = scmp.eq.s32.totalorder %s37, 0
    %p206 = por %p204, %p205
    %s207 = ssub.s32 %s39, %s46
    %p208 = scmp.eq.s32.totalorder %s207, 0
    %s210 = sadd.s32 %s209, 1
    %s211 = scalar_select %p208, %s209, %s210
    %p214 = pneg %p208
    %p215 = scmp.eq.s32.totalorder %s31, 3
    %p216 = por %p214, %p215
    %p217 = scmp.ne.s32.totalorder %s209, %s212
    %p218 = scmp.eq.s32.totalorder %s31, 0
    %p219 = por %p217, %p218
    %p220 = scmp.ne.s32.totalorder %s209, %s212
    %p221 = scmp.eq.s32.totalorder %s36, 3
    %p222 = por %p220, %p221
    %p223 = scmp.ne.s32.totalorder %s212, %s213
    %p224 = scmp.eq.s32.totalorder %s36, 0
    %p225 = por %p223, %p224
    %p226 = scmp.ne.s32.totalorder %s212, %s213
    %p227 = scmp.eq.s32.totalorder %s37, 3
    %p228 = por %p226, %p227
    %p230 = scmp.ne.s32.totalorder %s213, %s229
    %p231 = scmp.eq.s32.totalorder %s37, 0
    %p232 = por %p230, %p231
    %s233 = ssub.s32 %s39, %s46
    %p234 = scmp.eq.s32.totalorder %s233, 0
    %s236 = sadd.s32 %s235, 1
    %s237 = scalar_select %p234, %s235, %s236
    %p240 = pneg %p234
    %p241 = scmp.eq.s32.totalorder %s31, 3
    %p242 = por %p240, %p241
    %p243 = scmp.ne.s32.totalorder %s235, %s238
    %p244 = scmp.eq.s32.totalorder %s31, 0
    %p245 = por %p243, %p244
    %p246 = scmp.ne.s32.totalorder %s235, %s238
    %p247 = scmp.eq.s32.totalorder %s36, 3
    %p248 = por %p246, %p247
    %p249 = scmp.ne.s32.totalorder %s238, %s239
    %p250 = scmp.eq.s32.totalorder %s36, 0
    %p251 = por %p249, %p250
    %p252 = scmp.ne.s32.totalorder %s238, %s239
    %p253 = scmp.eq.s32.totalorder %s37, 3
    %p254 = por %p252, %p253
    %p256 = scmp.ne.s32.totalorder %s239, %s255
    %p257 = scmp.eq.s32.totalorder %s37, 0
    %p258 = por %p256, %p257
    %s259 = ssub.s32 %s39, %s46
    %p260 = scmp.eq.s32.totalorder %s259, 0
    %s262 = sadd.s32 %s261, 1
    %s263 = scalar_select %p260, %s261, %s262
    %p266 = pneg %p260
    %p267 = scmp.eq.s32.totalorder %s31, 3
    %p268 = por %p266, %p267
    %p269 = scmp.ne.s32.totalorder %s261, %s264
    %p270 = scmp.eq.s32.totalorder %s31, 0
    %p271 = por %p269, %p270
    %p272 = scmp.ne.s32.totalorder %s261, %s264
    %p273 = scmp.eq.s32.totalorder %s36, 3
    %p274 = por %p272, %p273
    %p275 = scmp.ne.s32.totalorder %s264, %s265
    %p276 = scmp.eq.s32.totalorder %s36, 0
    %p277 = por %p275, %p276
    %p278 = scmp.ne.s32.totalorder %s264, %s265
    %p279 = scmp.eq.s32.totalorder %s37, 3
    %p280 = por %p278, %p279
    %p282 = scmp.ne.s32.totalorder %s265, %s281
    %p283 = scmp.eq.s32.totalorder %s37, 0
    %p284 = por %p282, %p283
    %s285 = ssub.s32 %s39, %s46
    %p286 = scmp.eq.s32.totalorder %s285, 0
    %s288 = sadd.s32 %s287, 1
    %s289 = scalar_select %p286, %s287, %s288
    %p292 = pneg %p286
    %p293 = scmp.eq.s32.totalorder %s31, 3
    %p294 = por %p292, %p293
    %p295 = scmp.ne.s32.totalorder %s287, %s290
    %p296 = scmp.eq.s32.totalorder %s31, 0
    %p297 = por %p295, %p296
    %p298 = scmp.ne.s32.totalorder %s287, %s290
    %p299 = scmp.eq.s32.totalorder %s36, 3
    %p300 = por %p298, %p299
    %p301 = scmp.ne.s32.totalorder %s290, %s291
    %p302 = scmp.eq.s32.totalorder %s36, 0
    %p303 = por %p301, %p302
    %p304 = scmp.ne.s32.totalorder %s290, %s291
    %p305 = scmp.eq.s32.totalorder %s37, 3
    %p306 = por %p304, %p305
    %p308 = scmp.ne.s32.totalorder %s291, %s307
    %p309 = scmp.eq.s32.totalorder %s37, 0
    %p310 = por %p308, %p309
    %s311 = ssub.s32 %s39, %s46
    %p312 = scmp.eq.s32.totalorder %s311, 0
    %s314 = sadd.s32 %s313, 1
    %s315 = scalar_select %p312, %s313, %s314
    %p318 = pneg %p312
    %p319 = scmp.eq.s32.totalorder %s31, 3
    %p320 = por %p318, %p319
    %p321 = scmp.ne.s32.totalorder %s313, %s316
    %p322 = scmp.eq.s32.totalorder %s31, 0
    %p323 = por %p321, %p322
    %p324 = scmp.ne.s32.totalorder %s313, %s316
    %p325 = scmp.eq.s32.totalorder %s36, 3
    %p326 = por %p324, %p325
    %p327 = scmp.ne.s32.totalorder %s316, %s317
    %p328 = scmp.eq.s32.totalorder %s36, 0
    %p329 = por %p327, %p328
    %p330 = scmp.ne.s32.totalorder %s316, %s317
    %p331 = scmp.eq.s32.totalorder %s37, 3
    %p332 = por %p330, %p331
    %p334 = scmp.ne.s32.totalorder %s317, %s333
    %p335 = scmp.eq.s32.totalorder %s37, 0
    %p336 = por %p334, %p335
    %s337 = ssub.s32 %s39, %s46
    %p338 = scmp.eq.s32.totalorder %s337, 0
    %s340 = sadd.s32 %s339, 1
    %s341 = scalar_select %p338, %s339, %s340
    %p344 = pneg %p338
    %p345 = scmp.eq.s32.totalorder %s31, 3
    %p346 = por %p344, %p345
    %p347 = scmp.ne.s32.totalorder %s339, %s342
    %p348 = scmp.eq.s32.totalorder %s31, 0
    %p349 = por %p347, %p348
    %p350 = scmp.ne.s32.totalorder %s339, %s342
    %p351 = scmp.eq.s32.totalorder %s36, 3
    %p352 = por %p350, %p351
    %p353 = scmp.ne.s32.totalorder %s342, %s343
    %p354 = scmp.eq.s32.totalorder %s36, 0
    %p355 = por %p353, %p354
    %p356 = scmp.ne.s32.totalorder %s342, %s343
    %p357 = scmp.eq.s32.totalorder %s37, 3
    %p358 = por %p356, %p357
    %p360 = scmp.ne.s32.totalorder %s343, %s359
    %p361 = scmp.eq.s32.totalorder %s37, 0
    %p362 = por %p360, %p361
    %s363 = ssub.s32 %s39, %s46
    %p364 = scmp.eq.s32.totalorder %s363, 0
    %s366 = sadd.s32 %s365, 1
    %s367 = scalar_select %p364, %s365, %s366
    %p370 = pneg %p364
    %p371 = scmp.eq.s32.totalorder %s31, 3
    %p372 = por %p370, %p371
    %p373 = scmp.ne.s32.totalorder %s365, %s368
    %p374 = scmp.eq.s32.totalorder %s31, 0
    %p375 = por %p373, %p374
    %p376 = scmp.ne.s32.totalorder %s365, %s368
    %p377 = scmp.eq.s32.totalorder %s36, 3
    %p378 = por %p376, %p377
    %p379 = scmp.ne.s32.totalorder %s368, %s369
    %p380 = scmp.eq.s32.totalorder %s36, 0
    %p381 = por %p379, %p380
    %p382 = scmp.ne.s32.totalorder %s368, %s369
    %p383 = scmp.eq.s32.totalorder %s37, 3
    %p384 = por %p382, %p383
    %p386 = scmp.ne.s32.totalorder %s369, %s385
    %p387 = scmp.eq.s32.totalorder %s37, 0
    %p388 = por %p386, %p387
    %s389 = ssub.s32 %s39, %s46
    %p390 = scmp.eq.s32.totalorder %s389, 0
    %s392 = sadd.s32 %s391, 1
    %s393 = scalar_select %p390, %s391, %s392
    %p396 = pneg %p390
    %p397 = scmp.eq.s32.totalorder %s31, 3
    %p398 = por %p396, %p397
    %p399 = scmp.ne.s32.totalorder %s391, %s394
    %p400 = scmp.eq.s32.totalorder %s31, 0
    %p401 = por %p399, %p400
    %p402 = scmp.ne.s32.totalorder %s391, %s394
    %p403 = scmp.eq.s32.totalorder %s36, 3
    %p404 = por %p402, %p403
    %p405 = scmp.ne.s32.totalorder %s394, %s395
    %p406 = scmp.eq.s32.totalorder %s36, 0
    %p407 = por %p405, %p406
    %p408 = scmp.ne.s32.totalorder %s394, %s395
    %p409 = scmp.eq.s32.totalorder %s37, 3
    %p410 = por %p408, %p409
    %p412 = scmp.ne.s32.totalorder %s395, %s411
    %p413 = scmp.eq.s32.totalorder %s37, 0
    %p414 = por %p412, %p413
    %s415 = ssub.s32 %s39, %s46
    %p416 = scmp.eq.s32.totalorder %s415, 0
    %s418 = sadd.s32 %s417, 1
    %s419 = scalar_select %p416, %s417, %s418
    %p422 = pneg %p416
    %p423 = scmp.eq.s32.totalorder %s31, 3
    %p424 = por %p422, %p423
    %p425 = scmp.ne.s32.totalorder %s417, %s420
    %p426 = scmp.eq.s32.totalorder %s31, 0
    %p427 = por %p425, %p426
    %p428 = scmp.ne.s32.totalorder %s417, %s420
    %p429 = scmp.eq.s32.totalorder %s36, 3
    %p430 = por %p428, %p429
    %p431 = scmp.ne.s32.totalorder %s420, %s421
    %p432 = scmp.eq.s32.totalorder %s36, 0
    %p433 = por %p431, %p432
    %p434 = scmp.ne.s32.totalorder %s420, %s421
    %p435 = scmp.eq.s32.totalorder %s37, 3
    %p436 = por %p434, %p435
    %p438 = scmp.ne.s32.totalorder %s421, %s437
    %p439 = scmp.eq.s32.totalorder %s37, 0
    %p440 = por %p438, %p439
    %s441 = ssub.s32 %s39, %s46
    %p442 = scmp.eq.s32.totalorder %s441, 0
    %s444 = sadd.s32 %s443, 1
    %s445 = scalar_select %p442, %s443, %s444
    %p448 = pneg %p442
    %p449 = scmp.eq.s32.totalorder %s31, 3
    %p450 = por %p448, %p449
    %p451 = scmp.ne.s32.totalorder %s443, %s446
    %p452 = scmp.eq.s32.totalorder %s31, 0
    %p453 = por %p451, %p452
    %p454 = scmp.ne.s32.totalorder %s443, %s446
    %p455 = scmp.eq.s32.totalorder %s36, 3
    %p456 = por %p454, %p455
    %p457 = scmp.ne.s32.totalorder %s446, %s447
    %p458 = scmp.eq.s32.totalorder %s36, 0
    %p459 = por %p457, %p458
    %p460 = scmp.ne.s32.totalorder %s446, %s447
    %p461 = scmp.eq.s32.totalorder %s37, 3
    %p462 = por %p460, %p461
    %p464 = scmp.ne.s32.totalorder %s447, %s463
    %p465 = scmp.eq.s32.totalorder %s37, 0
    %p466 = por %p464, %p465
    %s467 = ssub.s32 %s38, %s50
    %p468 = scmp.eq.s32.totalorder %s467, 0
    %s470 = sadd.s32 %s469, 1
    %s471 = scalar_select %p468, %s469, %s470
    %p474 = pneg %p468
    %p475 = scmp.eq.s32.totalorder %s31, 3
    %p476 = por %p474, %p475
    %p477 = scmp.ne.s32.totalorder %s469, %s472
    %p478 = scmp.eq.s32.totalorder %s31, 0
    %p479 = por %p477, %p478
    %p480 = scmp.ne.s32.totalorder %s469, %s472
    %p481 = scmp.eq.s32.totalorder %s36, 3
    %p482 = por %p480, %p481
    %p483 = scmp.ne.s32.totalorder %s472, %s473
    %p484 = scmp.eq.s32.totalorder %s36, 0
    %p485 = por %p483, %p484
    %p486 = scmp.ne.s32.totalorder %s472, %s473
    %p487 = scmp.eq.s32.totalorder %s37, 3
    %p488 = por %p486, %p487
    %p490 = scmp.ne.s32.totalorder %s473, %s489
    %p491 = scmp.eq.s32.totalorder %s37, 0
    %p492 = por %p490, %p491
    %s493 = ssub.s32 %s38, %s50
    %p494 = scmp.eq.s32.totalorder %s493, 0
    %s496 = sadd.s32 %s495, 1
    %s497 = scalar_select %p494, %s495, %s496
    %p500 = pneg %p494
    %p501 = scmp.eq.s32.totalorder %s31, 3
    %p502 = por %p500, %p501
    %p503 = scmp.ne.s32.totalorder %s495, %s498
    %p504 = scmp.eq.s32.totalorder %s31, 0
    %p505 = por %p503, %p504
    %p506 = scmp.ne.s32.totalorder %s495, %s498
    %p507 = scmp.eq.s32.totalorder %s36, 3
    %p508 = por %p506, %p507
    %p509 = scmp.ne.s32.totalorder %s498, %s499
    %p510 = scmp.eq.s32.totalorder %s36, 0
    %p511 = por %p509, %p510
    %p512 = scmp.ne.s32.totalorder %s498, %s499
    %p513 = scmp.eq.s32.totalorder %s37, 3
    %p514 = por %p512, %p513
    %p516 = scmp.ne.s32.totalorder %s499, %s515
    %p517 = scmp.eq.s32.totalorder %s37, 0
    %p518 = por %p516, %p517
    %p519 = scmp.le.s32.totalorder 1, %s31
    %p520 = scmp.lt.s32.totalorder %s31, 5
    %p521 = pnand %p519, %p520
    %p522 = pneg %p521
    // Predicated region
    $region9: #{_lambda_.1} parent=5 // pred_check
      _
    $region10: #{_lambda_.1} parent=5 // pred_check_branch
      %524 = sbr.rel (%p521) target = $region12
    $region11: #{_lambda_.1} parent=5 // pred_region
      %s525 = ssub.s32 %s31, 1
    $region12: #{_lambda_.1} parent=5 // pred_fallthru
      _
    %p526 = scmp.lt.s32.totalorder %s31, 4
    // Predicated region
    $region13: #{_lambda_.1} parent=5 // pred_check
      %p527 = pneg %p526
    $region14: #{_lambda_.1} parent=5 // pred_check_branch
      %529 = sbr.rel (%p527) target = $region16
    $region15: #{_lambda_.1} parent=5 // pred_region
      // Predicated region
      $region17: #{_lambda_.1} parent=15 // pred_check
        %p530 = pneg %p63
      $region18: #{_lambda_.1} parent=15 // pred_check_branch
        %532 = sbr.rel (%p530) target = $region20
      $region19: #{_lambda_.1} parent=15 // pred_region
        %p533 = scmp.lt.s32.totalorder %s38, 1
        %s534 = scalar_select %p533, %s38, 1
        %s535 = smul.addr %s534, 8
        %s536 = scalar_lea.vmem %s1, %s535
      $region20: #{_lambda_.1} parent=15 // pred_fallthru
        _
      // Predicated region
      $region21: #{_lambda_.1} parent=15 // pred_check
        %p537 = pneg %p89
      $region22: #{_lambda_.1} parent=15 // pred_check_branch
        %539 = sbr.rel (%p537) target = $region24
      $region23: #{_lambda_.1} parent=15 // pred_region
        %p540 = scmp.lt.s32.totalorder %s38, 1
        %s541 = scalar_select %p540, %s38, 1
        %s542 = scalar_lea.vmem %s2, %s541
      $region24: #{_lambda_.1} parent=15 // pred_fallthru
        _
      // Predicated region
      $region25: #{_lambda_.1} parent=15 // pred_check
        %p543 = pneg %p115
      $region26: #{_lambda_.1} parent=15 // pred_check_branch
        %545 = sbr.rel (%p543) target = $region28
      $region27: #{_lambda_.1} parent=15 // pred_region
        %p546 = scmp.lt.s32.totalorder %s39, 1
        %s547 = scalar_select %p546, %s39, 1
        %s548 = smul.addr %s547, 2
        %s549 = smul.addr %s548, 8
        %s550 = scalar_lea.vmem %s3, %s549
      $region28: #{_lambda_.1} parent=15 // pred_fallthru
        _
      // Predicated region
      $region29: #{_lambda_.1} parent=15 // pred_check
        %p551 = pneg %p141
      $region30: #{_lambda_.1} parent=15 // pred_check_branch
        %553 = sbr.rel (%p551) target = $region32
      $region31: #{_lambda_.1} parent=15 // pred_region
        %p554 = scmp.lt.s32.totalorder %s39, 1
        %s555 = scalar_select %p554, %s39, 1
        %s556 = scalar_lea.vmem %s4, %s555
      $region32: #{_lambda_.1} parent=15 // pred_fallthru
        _
      // Predicated region
      $region33: #{_lambda_.1} parent=15 // pred_check
        %p557 = pneg %p167
      $region34: #{_lambda_.1} parent=15 // pred_check_branch
        %559 = sbr.rel (%p557) target = $region36
      $region35: #{_lambda_.1} parent=15 // pred_region
        %p560 = scmp.lt.s32.totalorder %s39, 1
        %s561 = scalar_select %p560, %s39, 1
        %s562 = smul.addr %s561, 4
        %s563 = scalar_lea.vmem %s5, %s562
      $region36: #{_lambda_.1} parent=15 // pred_fallthru
        _
      // Predicated region
      $region37: #{_lambda_.1} parent=15 // pred_check
        %p564 = pneg %p193
      $region38: #{_lambda_.1} parent=15 // pred_check_branch
        %566 = sbr.rel (%p564) target = $region40
      $region39: #{_lambda_.1} parent=15 // pred_region
        %p567 = scmp.lt.s32.totalorder %s39, 1
        %s568 = scalar_select %p567, %s39, 1
        %s569 = scalar_lea.vmem %s6, %s568
      $region40: #{_lambda_.1} parent=15 // pred_fallthru
        _
      // Predicated region
      $region41: #{_lambda_.1} parent=15 // pred_check
        %p570 = pneg %p219
      $region42: #{_lambda_.1} parent=15 // pred_check_branch
        %572 = sbr.rel (%p570) target = $region44
      $region43: #{_lambda_.1} parent=15 // pred_region
        %p573 = scmp.lt.s32.totalorder %s39, 1
        %s574 = scalar_select %p573, %s39, 1
        %s575 = smul.addr %s574, 2
        %s576 = smul.addr %s575, 4
        %s577 = scalar_lea.vmem %s7, %s576
      $region44: #{_lambda_.1} parent=15 // pred_fallthru
        _
      // Predicated region
      $region45: #{_lambda_.1} parent=15 // pred_check
        %p578 = pneg %p245
      $region46: #{_lambda_.1} parent=15 // pred_check_branch
        %580 = sbr.rel (%p578) target = $region48
      $region47: #{_lambda_.1} parent=15 // pred_region
        %p581 = scmp.lt.s32.totalorder %s39, 1
        %s582 = scalar_select %p581, %s39, 1
        %s583 = scalar_lea.vmem %s8, %s582
      $region48: #{_lambda_.1} parent=15 // pred_fallthru
        _
      // Predicated region
      $region49: #{_lambda_.1} parent=15 // pred_check
        %p584 = pneg %p271
      $region50: #{_lambda_.1} parent=15 // pred_check_branch
        %586 = sbr.rel (%p584) target = $region52
      $region51: #{_lambda_.1} parent=15 // pred_region
        %p587 = scmp.lt.s32.totalorder %s39, 1
        %s588 = scalar_select %p587, %s39, 1
        %s589 = smul.addr %s588, 40
        %s590 = smul.addr %s589, 4
        %s591 = scalar_lea.vmem %s9, %s590
      $region52: #{_lambda_.1} parent=15 // pred_fallthru
        _
      // Predicated region
      $region53: #{_lambda_.1} parent=15 // pred_check
        %p592 = pneg %p297
      $region54: #{_lambda_.1} parent=15 // pred_check_branch
        %594 = sbr.rel (%p592) target = $region56
      $region55: #{_lambda_.1} parent=15 // pred_region
        %p595 = scmp.lt.s32.totalorder %s39, 1
        %s596 = scalar_select %p595, %s39, 1
        %s597 = smul.addr %s596, 2
        %s598 = scalar_lea.vmem %s10, %s597
      $region56: #{_lambda_.1} parent=15 // pred_fallthru
        _
      // Predicated region
      $region57: #{_lambda_.1} parent=15 // pred_check
        %p599 = pneg %p323
      $region58: #{_lambda_.1} parent=15 // pred_check_branch
        %601 = sbr.rel (%p599) target = $region60
      $region59: #{_lambda_.1} parent=15 // pred_region
        %p602 = scmp.lt.s32.totalorder %s39, 1
        %s603 = scalar_select %p602, %s39, 1
        %s604 = smul.addr %s603, 4
        %s605 = smul.addr %s604, 4
        %s606 = scalar_lea.vmem %s11, %s605
      $region60: #{_lambda_.1} parent=15 // pred_fallthru
        _
      // Predicated region
      $region61: #{_lambda_.1} parent=15 // pred_check
        %p607 = pneg %p349
      $region62: #{_lambda_.1} parent=15 // pred_check_branch
        %609 = sbr.rel (%p607) target = $region64
      $region63: #{_lambda_.1} parent=15 // pred_region
        %p610 = scmp.lt.s32.totalorder %s39, 1
        %s611 = scalar_select %p610, %s39, 1
        %s612 = scalar_lea.vmem %s12, %s611
      $region64: #{_lambda_.1} parent=15 // pred_fallthru
        _
      // Predicated region
      $region65: #{_lambda_.1} parent=15 // pred_check
        %p613 = pneg %p375
      $region66: #{_lambda_.1} parent=15 // pred_check_branch
        %615 = sbr.rel (%p613) target = $region68
      $region67: #{_lambda_.1} parent=15 // pred_region
        %p616 = scmp.lt.s32.totalorder %s39, 1
        %s617 = scalar_select %p616, %s39, 1
        %s618 = smul.addr %s617, 4
        %s619 = smul.addr %s618, 4
        %s620 = scalar_lea.vmem %s13, %s619
      $region68: #{_lambda_.1} parent=15 // pred_fallthru
        _
      // Predicated region
      $region69: #{_lambda_.1} parent=15 // pred_check
        %p621 = pneg %p401
      $region70: #{_lambda_.1} parent=15 // pred_check_branch
        %623 = sbr.rel (%p621) target = $region72
      $region71: #{_lambda_.1} parent=15 // pred_region
        %p624 = scmp.lt.s32.totalorder %s39, 1
        %s625 = scalar_select %p624, %s39, 1
        %s626 = scalar_lea.vmem %s14, %s625
      $region72: #{_lambda_.1} parent=15 // pred_fallthru
        _
      // Predicated region
      $region73: #{_lambda_.1} parent=15 // pred_check
        %p627 = pneg %p427
      $region74: #{_lambda_.1} parent=15 // pred_check_branch
        %629 = sbr.rel (%p627) target = $region76
      $region75: #{_lambda_.1} parent=15 // pred_region
        %p630 = scmp.lt.s32.totalorder %s39, 1
        %s631 = scalar_select %p630, %s39, 1
        %s632 = smul.addr %s631, 4
        %s633 = smul.addr %s632, 4
        %s634 = scalar_lea.vmem %s15, %s633
      $region76: #{_lambda_.1} parent=15 // pred_fallthru
        _
      // Predicated region
      $region77: #{_lambda_.1} parent=15 // pred_check
        %p635 = pneg %p453
      $region78: #{_lambda_.1} parent=15 // pred_check_branch
        %637 = sbr.rel (%p635) target = $region80
      $region79: #{_lambda_.1} parent=15 // pred_region
        %p638 = scmp.lt.s32.totalorder %s39, 1
        %s639 = scalar_select %p638, %s39, 1
        %s640 = scalar_lea.vmem %s16, %s639
      $region80: #{_lambda_.1} parent=15 // pred_fallthru
        _
    $region16: #{_lambda_.1} parent=5 // pred_fallthru
      _
    %p641 = scmp.le.s32.totalorder 1, %s31
    %p642 = scmp.lt.s32.totalorder %s31, 5
    %p643 = pnand %p641, %p642
    %p644 = pneg %p643
    // Predicated region
    $region81: #{_lambda_.1} parent=5 // pred_check
      _
    $region82: #{_lambda_.1} parent=5 // pred_check_branch
      %646 = sbr.rel (%p643) target = $region84
    $region83: #{_lambda_.1} parent=5 // pred_region
      %s647 = ssub.s32 %s31, 1
      %p648 = scmp.lt.s32.totalorder %s40, 1
      %s649 = scalar_select %p648, %s40, 1
      %s650 = smul.addr %s649, 8
      %s651 = scalar_lea.vmem %s1, %s650
      %p652 = pneg %p69
      %p653 = pneg %p66
      %p654 = scmp.lt.s32.totalorder %s40, 1
      %s655 = scalar_select %p654, %s40, 1
      %s656 = scalar_lea.vmem %s2, %s655
      %p657 = pneg %p95
      %p658 = pneg %p92
      %p659 = scmp.lt.s32.totalorder %s41, 1
      %s660 = scalar_select %p659, %s41, 1
      %s661 = smul.addr %s660, 2
      %s662 = smul.addr %s661, 8
      %s663 = scalar_lea.vmem %s3, %s662
      %p664 = pneg %p121
      %p665 = pneg %p118
      %p666 = scmp.lt.s32.totalorder %s41, 1
      %s667 = scalar_select %p666, %s41, 1
      %s668 = scalar_lea.vmem %s4, %s667
      %p669 = pneg %p147
      %p670 = pneg %p144
      %p671 = scmp.lt.s32.totalorder %s41, 1
      %s672 = scalar_select %p671, %s41, 1
      %s673 = smul.addr %s672, 4
      %s674 = scalar_lea.vmem %s5, %s673
      %p675 = pneg %p173
      %p676 = pneg %p170
      %p677 = scmp.lt.s32.totalorder %s41, 1
      %s678 = scalar_select %p677, %s41, 1
      %s679 = scalar_lea.vmem %s6, %s678
      %p680 = pneg %p199
      %p681 = pneg %p196
      %p682 = scmp.lt.s32.totalorder %s41, 1
      %s683 = scalar_select %p682, %s41, 1
      %s684 = smul.addr %s683, 2
      %s685 = smul.addr %s684, 4
      %s686 = scalar_lea.vmem %s7, %s685
      %p687 = pneg %p225
      %p688 = pneg %p222
      %p689 = scmp.lt.s32.totalorder %s41, 1
      %s690 = scalar_select %p689, %s41, 1
      %s691 = scalar_lea.vmem %s8, %s690
      %p692 = pneg %p251
      %p693 = pneg %p248
      %p694 = scmp.lt.s32.totalorder %s41, 1
      %s695 = scalar_select %p694, %s41, 1
      %s696 = smul.addr %s695, 40
      %s697 = smul.addr %s696, 4
      %s698 = scalar_lea.vmem %s9, %s697
      %p699 = pneg %p277
      %p700 = pneg %p274
      %p701 = scmp.lt.s32.totalorder %s41, 1
      %s702 = scalar_select %p701, %s41, 1
      %s703 = smul.addr %s702, 2
      %s704 = scalar_lea.vmem %s10, %s703
      %p705 = pneg %p303
      %p706 = pneg %p300
      %p707 = scmp.lt.s32.totalorder %s41, 1
      %s708 = scalar_select %p707, %s41, 1
      %s709 = smul.addr %s708, 4
      %s710 = smul.addr %s709, 4
      %s711 = scalar_lea.vmem %s11, %s710
      %p712 = pneg %p329
      %p713 = pneg %p326
      %p714 = scmp.lt.s32.totalorder %s41, 1
      %s715 = scalar_select %p714, %s41, 1
      %s716 = scalar_lea.vmem %s12, %s715
      %p717 = pneg %p355
      %p718 = pneg %p352
      %p719 = scmp.lt.s32.totalorder %s41, 1
      %s720 = scalar_select %p719, %s41, 1
      %s721 = smul.addr %s720, 4
      %s722 = smul.addr %s721, 4
      %s723 = scalar_lea.vmem %s13, %s722
      %p724 = pneg %p381
      %p725 = pneg %p378
      %p726 = scmp.lt.s32.totalorder %s41, 1
      %s727 = scalar_select %p726, %s41, 1
      %s728 = scalar_lea.vmem %s14, %s727
      %p729 = pneg %p407
      %p730 = pneg %p404
      %p731 = scmp.lt.s32.totalorder %s41, 1
      %s732 = scalar_select %p731, %s41, 1
      %s733 = smul.addr %s732, 4
      %s734 = smul.addr %s733, 4
      %s735 = scalar_lea.vmem %s15, %s734
      %p736 = pneg %p433
      %p737 = pneg %p430
      %p738 = scmp.lt.s32.totalorder %s41, 1
      %s739 = scalar_select %p738, %s41, 1
      %s740 = scalar_lea.vmem %s16, %s739
      %p741 = pneg %p459
      %p742 = pneg %p456
      %p743 = pneg %p485
      %p744 = pneg %p482
      %p745 = scmp.lt.s32.totalorder %s40, 1
      %s746 = scalar_select %p745, %s40, 1
      %s747 = smul.addr %s746, 8
      %s748 = scalar_lea.vmem %s17, %s747
      %p749 = pneg %p511
      %p750 = pneg %p508
      %p751 = scmp.lt.s32.totalorder %s40, 1
      %s752 = scalar_select %p751, %s40, 1
      %s753 = scalar_lea.vmem %s18, %s752
      %p754 = scmp.lt.s32.totalorder %s40, 1
      %s755 = scalar_select %p754, %s40, 1
      %s756 = smul.addr %s755, 8
      %s757 = scalar_lea.vmem %s1, %s756
      %p758 = scmp.lt.s32.totalorder %s40, 1
      %s759 = scalar_select %p758, %s40, 1
      %s760 = scalar_lea.vmem %s2, %s759
      %p761 = scmp.lt.s32.totalorder %s41, 1
      %s762 = scalar_select %p761, %s41, 1
      %s763 = smul.addr %s762, 2
      %s764 = smul.addr %s763, 8
      %s765 = scalar_lea.vmem %s3, %s764
      %p766 = scmp.lt.s32.totalorder %s41, 1
      %s767 = scalar_select %p766, %s41, 1
      %s768 = scalar_lea.vmem %s4, %s767
      %p769 = scmp.lt.s32.totalorder %s41, 1
      %s770 = scalar_select %p769, %s41, 1
      %s771 = smul.addr %s770, 4
      %s772 = scalar_lea.vmem %s5, %s771
      %p773 = scmp.lt.s32.totalorder %s41, 1
      %s774 = scalar_select %p773, %s41, 1
      %s775 = scalar_lea.vmem %s6, %s774
      %p776 = scmp.lt.s32.totalorder %s41, 1
      %s777 = scalar_select %p776, %s41, 1
      %s778 = smul.addr %s777, 2
      %s779 = smul.addr %s778, 4
      %s780 = scalar_lea.vmem %s7, %s779
      %p781 = scmp.lt.s32.totalorder %s41, 1
      %s782 = scalar_select %p781, %s41, 1
      %s783 = scalar_lea.vmem %s8, %s782
      %p784 = scmp.lt.s32.totalorder %s41, 1
      %s785 = scalar_select %p784, %s41, 1
      %s786 = smul.addr %s785, 40
      %s787 = smul.addr %s786, 4
      %s788 = scalar_lea.vmem %s9, %s787
      %p789 = scmp.lt.s32.totalorder %s41, 1
      %s790 = scalar_select %p789, %s41, 1
      %s791 = smul.addr %s790, 2
      %s792 = scalar_lea.vmem %s10, %s791
      %p793 = scmp.lt.s32.totalorder %s41, 1
      %s794 = scalar_select %p793, %s41, 1
      %s795 = smul.addr %s794, 4
      %s796 = smul.addr %s795, 4
      %s797 = scalar_lea.vmem %s11, %s796
      %p798 = scmp.lt.s32.totalorder %s41, 1
      %s799 = scalar_select %p798, %s41, 1
      %s800 = scalar_lea.vmem %s12, %s799
      %p801 = scmp.lt.s32.totalorder %s41, 1
      %s802 = scalar_select %p801, %s41, 1
      %s803 = smul.addr %s802, 4
      %s804 = smul.addr %s803, 4
      %s805 = scalar_lea.vmem %s13, %s804
      %p806 = scmp.lt.s32.totalorder %s41, 1
      %s807 = scalar_select %p806, %s41, 1
      %s808 = scalar_lea.vmem %s14, %s807
      %p809 = scmp.lt.s32.totalorder %s41, 1
      %s810 = scalar_select %p809, %s41, 1
      %s811 = smul.addr %s810, 4
      %s812 = smul.addr %s811, 4
      %s813 = scalar_lea.vmem %s15, %s812
      %p814 = scmp.lt.s32.totalorder %s41, 1
      %s815 = scalar_select %p814, %s41, 1
      %s816 = scalar_lea.vmem %s16, %s815
      %p817 = scmp.lt.s32.totalorder %s40, 1
      %s818 = scalar_select %p817, %s40, 1
      %s819 = smul.addr %s818, 8
      %s820 = scalar_lea.vmem %s17, %s819
      %p821 = scmp.lt.s32.totalorder %s40, 1
      %s822 = scalar_select %p821, %s40, 1
      %s823 = scalar_lea.vmem %s18, %s822
      %p825 = scmp.eq.s32.totalorder %s41, 0
      // Predicated region
      $region85: #{_lambda_.1} parent=83 // pred_check
        %p826 = pneg %p825
      $region86: #{_lambda_.1} parent=83 // pred_check_branch
        %828 = sbr.rel (%p826) target = $region88
      $region87: #{_lambda_.1} parent=83 // pred_region
        %v829 = vld [vmem:[%s757] sm:$0xff]
        %vm830 = vcmask 130048
        %831 = vst.msk [vmem:[%s820] sm:$0xff] %vm830, %v829
        %vm832 = vcmask 0
        %833 = vst.msk [vmem:[%s823] sm:$0x1] %vm832, 0.0
      $region88: #{_lambda_.1} parent=83 // pred_fallthru
        _
      %v834 = vlaneseq
      %v835 = vshrl.u32 %v834, 7
      %s836 = sld [smem:[#allocation4 + %s40]]
      %v837 = vstv %s836
      %vm838 = vcmp.lt.s32.totalorder %v835, %v837
      %v839 = vsel %vm838, 1, 0
      %v840 = vcvt.s32.f32 %v839
      %v841 = vld [vmem:[%s820] sm:$0xff]
      %v842 = vld [vmem:[%s765] sm:$0xff]
      %v843 = vld [vmem:[%s765 + $0x8] sm:$0xff]
      %v844 = vld [vmem:[%s768] sm:$0x1]
      %v846 = vlaneseq
      %v847 = vshrl.u32 %v846, 7
      %v848 = vsub.s32 0, %v847
      %v849 = vrot.slane %v844, %v848
      %vm851 = vcmask 130048
      %v853 = vsel %vm851, %v841, 0
      %855 = vmatprep.subr.mxu0 0.0
      %856 = vmatpush1.msra.mxu0 0.0
      %857 = vmatprep.subr.mxu0 0.0
      %858 = vmatpush1.msra.mxu0 0.0
      %859 = vmatprep.subr.mxu0 0.0
      %860 = vmatpush1.msra.mxu0 0.0
      %861 = vmatprep.subr.mxu0 0.0
      %862 = vmatpush1.msra.mxu0 0.0
      %863 = vmatprep.subr.mxu0 0.0
      %864 = vmatpush1.msra.mxu0 0.0
      %865 = vmatprep.subr.mxu0 0.0
      %866 = vmatpush1.msra.mxu0 0.0
      %867 = vmatprep.subr.mxu0 0.0
      %868 = vmatpush1.msra.mxu0 0.0
      %869 = vmatprep.subr.mxu0 0.0
      %870 = vmatpush1.msra.mxu0 0.0
      %871 = vmatprep.subr.mxu0 0.0
      %872 = vmatpush1.msra.mxu0 0.0
      %873 = vmatprep.subr.mxu0 0.0
      %874 = vmatpush1.msra.mxu0 0.0
      %875 = vmatprep.subr.mxu0 0.0
      %876 = vmatpush1.msra.mxu0 0.0
      %877 = vmatprep.subr.mxu0 0.0
      %878 = vmatpush1.msra.mxu0 0.0
      %879 = vmatprep.subr.mxu0 0.0
      %880 = vmatpush1.msra.mxu0 0.0
      %881 = vmatprep.subr.mxu0 0.0
      %882 = vmatpush1.msra.mxu0 0.0
      %883 = vmatprep.subr.mxu0 0.0
      %884 = vmatpush1.msra.mxu0 %v843
      %885 = vmatprep.subr.mxu0 0.0
      %886 = vmatpush1.msra.mxu0 %v842
      %887 = vmatprep.subr.mxu0 0.0
      %888 = vmatpush2.msra.mxu0 0.0
      %889 = vmatprep.subr.mxu0 0.0
      %890 = vmatpush2.msra.mxu0 0.0
      %891 = vmatprep.subr.mxu0 0.0
      %892 = vmatpush2.msra.mxu0 0.0
      %893 = vmatprep.subr.mxu0 0.0
      %894 = vmatpush2.msra.mxu0 0.0
      %895 = vmatprep.subr.mxu0 0.0
      %896 = vmatpush2.msra.mxu0 0.0
      %897 = vmatprep.subr.mxu0 0.0
      %898 = vmatpush2.msra.mxu0 0.0
      %899 = vmatprep.subr.mxu0 0.0
      %900 = vmatpush2.msra.mxu0 0.0
      %901 = vmatprep.subr.mxu0 0.0
      %902 = vmatpush2.msra.mxu0 0.0
      %903 = vmatprep.subr.mxu0 0.0
      %904 = vmatpush2.msra.mxu0 0.0
      %905 = vmatprep.subr.mxu0 0.0
      %906 = vmatpush2.msra.mxu0 0.0
      %907 = vmatprep.subr.mxu0 0.0
      %908 = vmatpush2.msra.mxu0 0.0
      %909 = vmatprep.subr.mxu0 0.0
      %910 = vmatpush2.msra.mxu0 0.0
      %911 = vmatprep.subr.mxu0 0.0
      %912 = vmatpush2.msra.mxu0 0.0
      %913 = vmatprep.subr.mxu0 0.0
      %914 = vmatpush2.msra.mxu0 0.0
      %915 = vmatprep.subr.mxu0 0.0
      %916 = vmatpush2.msra.mxu0 0.0
      %917 = vmatprep.subr.mxu0 0.0
      %918 = vmatpush2.msra.mxu0 0.0
      %919 = vmatprep.mubr.f32.mxu0 0.0
      %920 = vmatmul.mubr.f32.gmra.mxu0 %v853
      %v921 = vpop.f32.mrf.mxu0
      %v922 = vadd.f32 %v849, %v921
      %v923 = vpop.f32.mrf.mxu0
      %924 = vdwg.mxu0
      %v925 = vmul.f32 %v922, %v840
      %v926 = vpack.c.bf16 %v925, %v925
      %v927 = vld [vmem:[%s772] sm:$0xf]
      %v928 = vld [vmem:[%s775] sm:$0x1]
      %v930 = vlaneseq
      %v931 = vshrl.u32 %v930, 7
      %v932 = vsub.s32 0, %v931
      %v933 = vrot.slane %v928, %v932
      %vm935 = vcmask 64512
      %v937 = vsel %vm935, %v926, 0
      %vm939 = vcmask 1043456
      %v941 = vsel %vm939, %v927, 0
      %943 = vmatprep.subr.bf16.mxu0 0
      %944 = vmatpush1.bf16.msra.mxu0 0
      %945 = vmatprep.subr.bf16.mxu0 0
      %946 = vmatpush1.bf16.msra.mxu0 0
      %947 = vmatprep.subr.bf16.mxu0 0
      %948 = vmatpush1.bf16.msra.mxu0 0
      %949 = vmatprep.subr.bf16.mxu0 0
      %950 = vmatpush1.bf16.msra.mxu0 0
      %951 = vmatprep.subr.bf16.mxu0 0
      %952 = vmatpush1.bf16.msra.mxu0 0
      %953 = vmatprep.subr.bf16.mxu0 0
      %954 = vmatpush1.bf16.msra.mxu0 0
      %955 = vmatprep.subr.bf16.mxu0 0
      %956 = vmatpush1.bf16.msra.mxu0 0
      %957 = vmatprep.subr.bf16.mxu0 0
      %958 = vmatpush1.bf16.msra.mxu0 %v941
      %959 = vmatprep.subr.bf16.mxu0 0
      %960 = vmatpush2.bf16.msra.mxu0 0
      %961 = vmatprep.subr.bf16.mxu0 0
      %962 = vmatpush2.bf16.msra.mxu0 0
      %963 = vmatprep.subr.bf16.mxu0 0
      %964 = vmatpush2.bf16.msra.mxu0 0
      %965 = vmatprep.subr.bf16.mxu0 0
      %966 = vmatpush2.bf16.msra.mxu0 0
      %967 = vmatprep.subr.bf16.mxu0 0
      %968 = vmatpush2.bf16.msra.mxu0 0
      %969 = vmatprep.subr.bf16.mxu0 0
      %970 = vmatpush2.bf16.msra.mxu0 0
      %971 = vmatprep.subr.bf16.mxu0 0
      %972 = vmatpush2.bf16.msra.mxu0 0
      %973 = vmatprep.subr.bf16.mxu0 0
      %974 = vmatpush2.bf16.msra.mxu0 0
      %975 = vmatprep.mubr.bf16.mxu0 0
      %976 = vmatmul.mubr.bf16.gmra.mxu0 %v937
      %v977 = vpop.f32.mrf.mxu0
      %v978 = vadd.f32 %v933, %v977
      %v979 = vpop.f32.mrf.mxu0
      %v980 = vpop.f32.mrf.mxu0
      %v981 = vpop.f32.mrf.mxu0
      %982 = vdwg.mxu0
      %v983 = vmul.f32 %v978, %v840
      %v984 = vld [vmem:[%s760] sm:$0x1]
      %v985 = vpack.c.bf16 %v984, %v984
      %v986 = vld [vmem:[%s780] sm:$0xf]
      %v987 = vld [vmem:[%s780 + $0x4] sm:$0xf]
      %v988 = vld [vmem:[%s783] sm:$0x1]
      %v991 = vunpack.c.l.b16 %v986
      %v992 = vunpack.c.l.b16 %v987
      %v993 = vpack.c.b16 %v992, %v991
      %v996 = vsel %vm851, %v985, 0
      %998 = vmatprep.subr.bf16.mxu0 0
      %999 = vmatpush1.bf16.msra.mxu0 0
      %1000 = vmatprep.subr.bf16.mxu0 0
      %1001 = vmatpush1.bf16.msra.mxu0 0
      %1002 = vmatprep.subr.bf16.mxu0 0
      %1003 = vmatpush1.bf16.msra.mxu0 0
      %1004 = vmatprep.subr.bf16.mxu0 0
      %1005 = vmatpush1.bf16.msra.mxu0 0
      %1006 = vmatprep.subr.bf16.mxu0 0
      %1007 = vmatpush1.bf16.msra.mxu0 0
      %1008 = vmatprep.subr.bf16.mxu0 0
      %1009 = vmatpush1.bf16.msra.mxu0 0
      %1010 = vmatprep.subr.bf16.mxu0 0
      %1011 = vmatpush1.bf16.msra.mxu0 0
      %1012 = vmatprep.subr.bf16.mxu0 0
      %1013 = vmatpush1.bf16.msra.mxu0 %v993
      %1014 = vmatprep.subr.bf16.mxu0 0
      %1015 = vmatpush2.bf16.msra.mxu0 0
      %1016 = vmatprep.subr.bf16.mxu0 0
      %1017 = vmatpush2.bf16.msra.mxu0 0
      %1018 = vmatprep.subr.bf16.mxu0 0
      %1019 = vmatpush2.bf16.msra.mxu0 0
      %1020 = vmatprep.subr.bf16.mxu0 0
      %1021 = vmatpush2.bf16.msra.mxu0 0
      %1022 = vmatprep.subr.bf16.mxu0 0
      %1023 = vmatpush2.bf16.msra.mxu0 0
      %1024 = vmatprep.subr.bf16.mxu0 0
      %1025 = vmatpush2.bf16.msra.mxu0 0
      %1026 = vmatprep.subr.bf16.mxu0 0
      %1027 = vmatpush2.bf16.msra.mxu0 0
      %1028 = vmatprep.subr.bf16.mxu0 0
      %1029 = vmatpush2.bf16.msra.mxu0 0
      %1030 = vmatprep.mubr.bf16.mxu0 0
      %1031 = vmatmul.mubr.bf16.gmra.mxu0 %v996
      %v1032 = vpop.f32.mrf.mxu0
      %v1033 = vadd.f32 %v988, %v1032
      %v1034 = vpop.f32.mrf.mxu0
      %v1035 = vpop.f32.mrf.mxu0
      %v1036 = vpop.f32.mrf.mxu0
      %1037 = vdwg.mxu0
      %vm1038 = vcmask 261120
      %1039 = vst.msk [vmem:[#allocation2] sm:$0xff] %vm1038, 0.0
      %1040 = vst.msk [vmem:[#allocation2 + $0x8] sm:$0xff] %vm1038, 0.0
      %1041 = vst.msk [vmem:[#allocation2 + $0x10] sm:$0xff] %vm1038, 0.0
      %1042 = vst.msk [vmem:[#allocation2 + $0x8] sm:$0xff] %vm1038, %v983
      %v1043 = vld [vmem:[#allocation2 + $0x6] sm:$0xff]
      %v1044 = vld [vmem:[#allocation2 + $0x7] sm:$0xff]
      %v1045 = vld [vmem:[#allocation2 + $0x8] sm:$0xff]
      %v1046 = vld [vmem:[#allocation2 + $0x9] sm:$0xff]
      %v1047 = vld [vmem:[#allocation2 + $0xa] sm:$0xff]
      %1049 = vrot.lane.b32.xlu0 %v1044, 32
      %v1050 = vpop.permute.xlu0 %1049
      %1053 = vrot.lane.b32.xlu0 %v1045, 64
      %v1054 = vpop.permute.xlu0 %1053
      %1057 = vrot.lane.b32.xlu0 %v1046, 96
      %v1058 = vpop.permute.xlu0 %1057
      %v1060 = vsel %vm1038, %v1043, %v1050
      %vm1061 = vcmask 523264
      %v1062 = vsel %vm1061, %v1060, %v1054
      %vm1063 = vcmask 785408
      %v1064 = vsel %vm1063, %v1062, %v1058
      %v1065 = vpack.c.bf16 %v1064, %v1064
      %v1066 = vpack.c.bf16 %v1047, %v1047
      %v1067 = vld [vmem:[%s788] sm:$0xf]
      %v1068 = vld [vmem:[%s788 + $0x4] sm:$0xf]
      %v1069 = vld [vmem:[%s788 + $0x8] sm:$0xf]
      %v1070 = vld [vmem:[%s788 + $0xc] sm:$0xf]
      %v1071 = vld [vmem:[%s788 + $0x10] sm:$0xf]
      %v1072 = vld [vmem:[%s788 + $0x14] sm:$0xf]
      %v1073 = vld [vmem:[%s788 + $0x18] sm:$0xf]
      %v1074 = vld [vmem:[%s788 + $0x1c] sm:$0xf]
      %v1075 = vld [vmem:[%s788 + $0x20] sm:$0xf]
      %v1076 = vld [vmem:[%s788 + $0x24] sm:$0xf]
      %v1077 = vld [vmem:[%s788 + $0x28] sm:$0xf]
      %v1078 = vld [vmem:[%s788 + $0x2c] sm:$0xf]
      %v1079 = vld [vmem:[%s788 + $0x30] sm:$0xf]
      %v1080 = vld [vmem:[%s788 + $0x34] sm:$0xf]
      %v1081 = vld [vmem:[%s788 + $0x38] sm:$0xf]
      %v1082 = vld [vmem:[%s788 + $0x3c] sm:$0xf]
      %v1083 = vld [vmem:[%s788 + $0x40] sm:$0xf]
      %v1084 = vld [vmem:[%s788 + $0x44] sm:$0xf]
      %v1085 = vld [vmem:[%s788 + $0x48] sm:$0xf]
      %v1086 = vld [vmem:[%s788 + $0x4c] sm:$0xf]
      %v1087 = vld [vmem:[%s792] sm:$0x1]
      %v1089 = vlaneseq
      %v1090 = vshrl.u32 %v1089, 7
      %v1091 = vsub.s32 0, %v1090
      %v1092 = vrot.slane %v1087, %v1091
      %v1114 = vunpack.c.l.b16 %v1067
      %v1115 = vunpack.c.l.b16 %v1068
      %v1116 = vunpack.c.l.b16 %v1069
      %v1117 = vunpack.c.l.b16 %v1070
      %v1118 = vunpack.c.l.b16 %v1071
      %v1119 = vunpack.c.l.b16 %v1072
      %v1120 = vunpack.c.l.b16 %v1073
      %v1121 = vunpack.c.l.b16 %v1074
      %v1122 = vunpack.c.l.b16 %v1075
      %v1123 = vunpack.c.l.b16 %v1076
      %v1124 = vunpack.c.l.b16 %v1077
      %v1125 = vunpack.c.l.b16 %v1078
      %v1126 = vunpack.c.l.b16 %v1079
      %v1127 = vunpack.c.l.b16 %v1080
      %v1128 = vunpack.c.l.b16 %v1081
      %v1129 = vunpack.c.l.b16 %v1082
      %v1130 = vunpack.c.l.b16 %v1083
      %v1131 = vunpack.c.l.b16 %v1084
      %v1132 = vunpack.c.l.b16 %v1085
      %v1133 = vunpack.c.l.b16 %v1086
      %v1134 = vpack.c.b16 %v1115, %v1114
      %v1135 = vpack.c.b16 %v1117, %v1116
      %v1136 = vpack.c.b16 %v1119, %v1118
      %v1137 = vpack.c.b16 %v1121, %v1120
      %v1138 = vpack.c.b16 %v1123, %v1122
      %v1139 = vpack.c.b16 %v1125, %v1124
      %v1140 = vpack.c.b16 %v1127, %v1126
      %v1141 = vpack.c.b16 %v1129, %v1128
      %v1142 = vpack.c.b16 %v1131, %v1130
      %v1143 = vpack.c.b16 %v1133, %v1132
      %v1155 = vsel %vm1038, %v1066, 0
      %1157 = vmatprep.subr.bf16.mxu0 0
      %1158 = vmatpush1.bf16.msra.mxu0 %v1141
      %1159 = vmatprep.subr.bf16.mxu0 0
      %1160 = vmatpush1.bf16.msra.mxu0 %v1140
      %1161 = vmatprep.subr.bf16.mxu0 0
      %1162 = vmatpush1.bf16.msra.mxu0 %v1139
      %1163 = vmatprep.subr.bf16.mxu0 0
      %1164 = vmatpush1.bf16.msra.mxu0 %v1138
      %1165 = vmatprep.subr.bf16.mxu0 0
      %1166 = vmatpush1.bf16.msra.mxu0 %v1137
      %1167 = vmatprep.subr.bf16.mxu0 0
      %1168 = vmatpush1.bf16.msra.mxu0 %v1136
      %1169 = vmatprep.subr.bf16.mxu0 0
      %1170 = vmatpush1.bf16.msra.mxu0 %v1135
      %1171 = vmatprep.subr.bf16.mxu0 0
      %1172 = vmatpush1.bf16.msra.mxu0 %v1134
      %1173 = vmatprep.subr.bf16.mxu0 0
      %1174 = vmatpush2.bf16.msra.mxu0 0
      %1175 = vmatprep.subr.bf16.mxu0 0
      %1176 = vmatpush2.bf16.msra.mxu0 0
      %1177 = vmatprep.subr.bf16.mxu0 0
      %1178 = vmatpush2.bf16.msra.mxu0 0
      %1179 = vmatprep.subr.bf16.mxu0 0
      %1180 = vmatpush2.bf16.msra.mxu0 0
      %1181 = vmatprep.subr.bf16.mxu0 0
      %1182 = vmatpush2.bf16.msra.mxu0 0
      %1183 = vmatprep.subr.bf16.mxu0 0
      %1184 = vmatpush2.bf16.msra.mxu0 0
      %1185 = vmatprep.subr.bf16.mxu0 0
      %1186 = vmatpush2.bf16.msra.mxu0 %v1143
      %1187 = vmatprep.subr.bf16.mxu0 0
      %1188 = vmatpush2.bf16.msra.mxu0 %v1142
      %1189 = vmatprep.mubr.bf16.mxu0 %v1155
      %1190 = vmatmul.mubr.bf16.gmra.mxu0 %v1065
      %v1191 = vpop.f32.mrf.mxu0
      %v1192 = vadd.f32 %v1092, %v1191
      %v1193 = vpop.f32.mrf.mxu0
      %v1194 = vpop.f32.mrf.mxu0
      %v1195 = vpop.f32.mrf.mxu0
      %1196 = vdwg.mxu0
      %v1197 = vlaneseq
      %v1198 = vshrl.u32 %v1197, 7
      %v1199 = vsub.s32 0, %v1198
      %v1200 = vrot.slane %v1033, %v1199
      %v1201 = vadd.f32 %v1192, %v1200
      %v1202 = vtanh.pop %v1201
      %v1203 = vxor.u32 %v1201, 2147483648
      %v1204 = vmul.f32 %v1203, 1.442695
      %v1205 = vpow.pop %v1204
      %v1206 = vadd.f32 %v1205, 1.0
      %v1207 = vrcp.pop %v1206
      %v1208 = vmul.f32 1.0, %v1207
      %1210 = vrot.lane.b32.xlu0 %v1208, 96
      %v1211 = vpop.permute.xlu0 %1210
      %v1213 = vmul.f32 %v1202, %v1211
      %v1214 = vpack.c.bf16 %v1213, %v1213
      %v1215 = vld [vmem:[%s797] sm:$0xf]
      %v1216 = vld [vmem:[%s797 + $0x4] sm:$0xf]
      %v1217 = vld [vmem:[%s797 + $0x8] sm:$0xf]
      %v1218 = vld [vmem:[%s797 + $0xc] sm:$0xf]
      %v1219 = vld [vmem:[%s800] sm:$0x1]
      %v1221 = vlaneseq
      %v1222 = vshrl.u32 %v1221, 7
      %v1223 = vsub.s32 0, %v1222
      %v1224 = vrot.slane %v1219, %v1223
      %v1230 = vunpack.c.l.b16 %v1215
      %v1231 = vunpack.c.l.b16 %v1216
      %v1232 = vunpack.c.l.b16 %v1217
      %v1233 = vunpack.c.l.b16 %v1218
      %v1234 = vpack.c.b16 %v1231, %v1230
      %v1235 = vpack.c.b16 %v1233, %v1232
      %v1239 = vsel %vm1038, %v1214, 0
      %1241 = vmatprep.subr.bf16.mxu0 0
      %1242 = vmatpush1.bf16.msra.mxu0 0
      %1243 = vmatprep.subr.bf16.mxu0 0
      %1244 = vmatpush1.bf16.msra.mxu0 0
      %1245 = vmatprep.subr.bf16.mxu0 0
      %1246 = vmatpush1.bf16.msra.mxu0 0
      %1247 = vmatprep.subr.bf16.mxu0 0
      %1248 = vmatpush1.bf16.msra.mxu0 0
      %1249 = vmatprep.subr.bf16.mxu0 0
      %1250 = vmatpush1.bf16.msra.mxu0 0
      %1251 = vmatprep.subr.bf16.mxu0 0
      %1252 = vmatpush1.bf16.msra.mxu0 0
      %1253 = vmatprep.subr.bf16.mxu0 0
      %1254 = vmatpush1.bf16.msra.mxu0 %v1235
      %1255 = vmatprep.subr.bf16.mxu0 0
      %1256 = vmatpush1.bf16.msra.mxu0 %v1234
      %1257 = vmatprep.subr.bf16.mxu0 0
      %1258 = vmatpush2.bf16.msra.mxu0 0
      %1259 = vmatprep.subr.bf16.mxu0 0
      %1260 = vmatpush2.bf16.msra.mxu0 0
      %1261 = vmatprep.subr.bf16.mxu0 0
      %1262 = vmatpush2.bf16.msra.mxu0 0
      %1263 = vmatprep.subr.bf16.mxu0 0
      %1264 = vmatpush2.bf16.msra.mxu0 0
      %1265 = vmatprep.subr.bf16.mxu0 0
      %1266 = vmatpush2.bf16.msra.mxu0 0
      %1267 = vmatprep.subr.bf16.mxu0 0
      %1268 = vmatpush2.bf16.msra.mxu0 0
      %1269 = vmatprep.subr.bf16.mxu0 0
      %1270 = vmatpush2.bf16.msra.mxu0 0
      %1271 = vmatprep.subr.bf16.mxu0 0
      %1272 = vmatpush2.bf16.msra.mxu0 0
      %1273 = vmatprep.mubr.bf16.mxu0 0
      %1274 = vmatmul.mubr.bf16.gmra.mxu0 %v1239
      %v1275 = vpop.f32.mrf.mxu0
      %v1276 = vadd.f32 %v1224, %v1275
      %v1277 = vpop.f32.mrf.mxu0
      %v1278 = vpop.f32.mrf.mxu0
      %v1279 = vpop.f32.mrf.mxu0
      %1280 = vdwg.mxu0
      %v1281 = vadd.f32 %v983, %v1276
      %v1282 = vmul.f32 %v1281, %v840
      %1283 = vst.msk [vmem:[#allocation2 + $0x8] sm:$0xff] %vm1038, %v1282
      %v1284 = vld [vmem:[#allocation2 + $0x6] sm:$0xff]
      %v1285 = vld [vmem:[#allocation2 + $0x7] sm:$0xff]
      %v1286 = vld [vmem:[#allocation2 + $0x8] sm:$0xff]
      %v1287 = vld [vmem:[#allocation2 + $0x9] sm:$0xff]
      %v1288 = vld [vmem:[#allocation2 + $0xa] sm:$0xff]
      %1290 = vrot.lane.b32.xlu0 %v1285, 32
      %v1291 = vpop.permute.xlu0 %1290
      %1294 = vrot.lane.b32.xlu0 %v1286, 64
      %v1295 = vpop.permute.xlu0 %1294
      %1298 = vrot.lane.b32.xlu0 %v1287, 96
      %v1299 = vpop.permute.xlu0 %1298
      %v1301 = vsel %vm1038, %v1284, %v1291
      %v1302 = vsel %vm1061, %v1301, %v1295
      %v1303 = vsel %vm1063, %v1302, %v1299
      %v1304 = vpack.c.bf16 %v1303, %v1303
      %v1305 = vpack.c.bf16 %v1288, %v1288
      %s1306 = scalar_lea.vmem %s788, 80
      %v1307 = vld [vmem:[%s1306] sm:$0xf]
      %v1308 = vld [vmem:[%s1306 + $0x4] sm:$0xf]
      %v1309 = vld [vmem:[%s1306 + $0x8] sm:$0xf]
      %v1310 = vld [vmem:[%s1306 + $0xc] sm:$0xf]
      %v1311 = vld [vmem:[%s1306 + $0x10] sm:$0xf]
      %v1312 = vld [vmem:[%s1306 + $0x14] sm:$0xf]
      %v1313 = vld [vmem:[%s1306 + $0x18] sm:$0xf]
      %v1314 = vld [vmem:[%s1306 + $0x1c] sm:$0xf]
      %v1315 = vld [vmem:[%s1306 + $0x20] sm:$0xf]
      %v1316 = vld [vmem:[%s1306 + $0x24] sm:$0xf]
      %v1317 = vld [vmem:[%s1306 + $0x28] sm:$0xf]
      %v1318 = vld [vmem:[%s1306 + $0x2c] sm:$0xf]
      %v1319 = vld [vmem:[%s1306 + $0x30] sm:$0xf]
      %v1320 = vld [vmem:[%s1306 + $0x34] sm:$0xf]
      %v1321 = vld [vmem:[%s1306 + $0x38] sm:$0xf]
      %v1322 = vld [vmem:[%s1306 + $0x3c] sm:$0xf]
      %v1323 = vld [vmem:[%s1306 + $0x40] sm:$0xf]
      %v1324 = vld [vmem:[%s1306 + $0x44] sm:$0xf]
      %v1325 = vld [vmem:[%s1306 + $0x48] sm:$0xf]
      %v1326 = vld [vmem:[%s1306 + $0x4c] sm:$0xf]
      %s1327 = scalar_lea.vmem %s792, 1
      %v1328 = vld [vmem:[%s1327] sm:$0x1]
      %v1330 = vlaneseq
      %v1331 = vshrl.u32 %v1330, 7
      %v1332 = vsub.s32 0, %v1331
      %v1333 = vrot.slane %v1328, %v1332
      %v1355 = vunpack.c.l.b16 %v1307
      %v1356 = vunpack.c.l.b16 %v1308
      %v1357 = vunpack.c.l.b16 %v1309
      %v1358 = vunpack.c.l.b16 %v1310
      %v1359 = vunpack.c.l.b16 %v1311
      %v1360 = vunpack.c.l.b16 %v1312
      %v1361 = vunpack.c.l.b16 %v1313
      %v1362 = vunpack.c.l.b16 %v1314
      %v1363 = vunpack.c.l.b16 %v1315
      %v1364 = vunpack.c.l.b16 %v1316
      %v1365 = vunpack.c.l.b16 %v1317
      %v1366 = vunpack.c.l.b16 %v1318
      %v1367 = vunpack.c.l.b16 %v1319
      %v1368 = vunpack.c.l.b16 %v1320
      %v1369 = vunpack.c.l.b16 %v1321
      %v1370 = vunpack.c.l.b16 %v1322
      %v1371 = vunpack.c.l.b16 %v1323
      %v1372 = vunpack.c.l.b16 %v1324
      %v1373 = vunpack.c.l.b16 %v1325
      %v1374 = vunpack.c.l.b16 %v1326
      %v1375 = vpack.c.b16 %v1356, %v1355
      %v1376 = vpack.c.b16 %v1358, %v1357
      %v1377 = vpack.c.b16 %v1360, %v1359
      %v1378 = vpack.c.b16 %v1362, %v1361
      %v1379 = vpack.c.b16 %v1364, %v1363
      %v1380 = vpack.c.b16 %v1366, %v1365
      %v1381 = vpack.c.b16 %v1368, %v1367
      %v1382 = vpack.c.b16 %v1370, %v1369
      %v1383 = vpack.c.b16 %v1372, %v1371
      %v1384 = vpack.c.b16 %v1374, %v1373
      %v1396 = vsel %vm1038, %v1305, 0
      %1398 = vmatprep.subr.bf16.mxu0 0
      %1399 = vmatpush1.bf16.msra.mxu0 %v1382
      %1400 = vmatprep.subr.bf16.mxu0 0
      %1401 = vmatpush1.bf16.msra.mxu0 %v1381
      %1402 = vmatprep.subr.bf16.mxu0 0
      %1403 = vmatpush1.bf16.msra.mxu0 %v1380
      %1404 = vmatprep.subr.bf16.mxu0 0
      %1405 = vmatpush1.bf16.msra.mxu0 %v1379
      %1406 = vmatprep.subr.bf16.mxu0 0
      %1407 = vmatpush1.bf16.msra.mxu0 %v1378
      %1408 = vmatprep.subr.bf16.mxu0 0
      %1409 = vmatpush1.bf16.msra.mxu0 %v1377
      %1410 = vmatprep.subr.bf16.mxu0 0
      %1411 = vmatpush1.bf16.msra.mxu0 %v1376
      %1412 = vmatprep.subr.bf16.mxu0 0
      %1413 = vmatpush1.bf16.msra.mxu0 %v1375
      %1414 = vmatprep.subr.bf16.mxu0 0
      %1415 = vmatpush2.bf16.msra.mxu0 0
      %1416 = vmatprep.subr.bf16.mxu0 0
      %1417 = vmatpush2.bf16.msra.mxu0 0
      %1418 = vmatprep.subr.bf16.mxu0 0
      %1419 = vmatpush2.bf16.msra.mxu0 0
      %1420 = vmatprep.subr.bf16.mxu0 0
      %1421 = vmatpush2.bf16.msra.mxu0 0
      %1422 = vmatprep.subr.bf16.mxu0 0
      %1423 = vmatpush2.bf16.msra.mxu0 0
      %1424 = vmatprep.subr.bf16.mxu0 0
      %1425 = vmatpush2.bf16.msra.mxu0 0
      %1426 = vmatprep.subr.bf16.mxu0 0
      %1427 = vmatpush2.bf16.msra.mxu0 %v1384
      %1428 = vmatprep.subr.bf16.mxu0 0
      %1429 = vmatpush2.bf16.msra.mxu0 %v1383
      %1430 = vmatprep.mubr.bf16.mxu0 %v1396
      %1431 = vmatmul.mubr.bf16.gmra.mxu0 %v1304
      %v1432 = vpop.f32.mrf.mxu0
      %v1433 = vadd.f32 %v1333, %v1432
      %v1434 = vpop.f32.mrf.mxu0
      %v1435 = vpop.f32.mrf.mxu0
      %v1436 = vpop.f32.mrf.mxu0
      %1437 = vdwg.mxu0
      %1439 = vrot.lane.b32.xlu0 %v1200, 64
      %v1440 = vpop.permute.xlu0 %1439
      %v1442 = vadd.f32 %v1433, %v1440
      %v1443 = vtanh.pop %v1442
      %v1444 = vxor.u32 %v1442, 2147483648
      %v1445 = vmul.f32 %v1444, 1.442695
      %v1446 = vpow.pop %v1445
      %v1447 = vadd.f32 %v1446, 1.0
      %v1448 = vrcp.pop %v1447
      %v1449 = vmul.f32 1.0, %v1448
      %1451 = vrot.lane.b32.xlu0 %v1449, 96
      %v1452 = vpop.permute.xlu0 %1451
      %v1454 = vmul.f32 %v1443, %v1452
      %v1455 = vpack.c.bf16 %v1454, %v1454
      %v1456 = vld [vmem:[%s805] sm:$0xf]
      %v1457 = vld [vmem:[%s805 + $0x4] sm:$0xf]
      %v1458 = vld [vmem:[%s805 + $0x8] sm:$0xf]
      %v1459 = vld [vmem:[%s805 + $0xc] sm:$0xf]
      %v1460 = vld [vmem:[%s808] sm:$0x1]
      %v1462 = vlaneseq
      %v1463 = vshrl.u32 %v1462, 7
      %v1464 = vsub.s32 0, %v1463
      %v1465 = vrot.slane %v1460, %v1464
      %v1471 = vunpack.c.l.b16 %v1456
      %v1472 = vunpack.c.l.b16 %v1457
      %v1473 = vunpack.c.l.b16 %v1458
      %v1474 = vunpack.c.l.b16 %v1459
      %v1475 = vpack.c.b16 %v1472, %v1471
      %v1476 = vpack.c.b16 %v1474, %v1473
      %v1480 = vsel %vm1038, %v1455, 0
      %1482 = vmatprep.subr.bf16.mxu0 0
      %1483 = vmatpush1.bf16.msra.mxu0 0
      %1484 = vmatprep.subr.bf16.mxu0 0
      %1485 = vmatpush1.bf16.msra.mxu0 0
      %1486 = vmatprep.subr.bf16.mxu0 0
      %1487 = vmatpush1.bf16.msra.mxu0 0
      %1488 = vmatprep.subr.bf16.mxu0 0
      %1489 = vmatpush1.bf16.msra.mxu0 0
      %1490 = vmatprep.subr.bf16.mxu0 0
      %1491 = vmatpush1.bf16.msra.mxu0 0
      %1492 = vmatprep.subr.bf16.mxu0 0
      %1493 = vmatpush1.bf16.msra.mxu0 0
      %1494 = vmatprep.subr.bf16.mxu0 0
      %1495 = vmatpush1.bf16.msra.mxu0 %v1476
      %1496 = vmatprep.subr.bf16.mxu0 0
      %1497 = vmatpush1.bf16.msra.mxu0 %v1475
      %1498 = vmatprep.subr.bf16.mxu0 0
      %1499 = vmatpush2.bf16.msra.mxu0 0
      %1500 = vmatprep.subr.bf16.mxu0 0
      %1501 = vmatpush2.bf16.msra.mxu0 0
      %1502 = vmatprep.subr.bf16.mxu0 0
      %1503 = vmatpush2.bf16.msra.mxu0 0
      %1504 = vmatprep.subr.bf16.mxu0 0
      %1505 = vmatpush2.bf16.msra.mxu0 0
      %1506 = vmatprep.subr.bf16.mxu0 0
      %1507 = vmatpush2.bf16.msra.mxu0 0
      %1508 = vmatprep.subr.bf16.mxu0 0
      %1509 = vmatpush2.bf16.msra.mxu0 0
      %1510 = vmatprep.subr.bf16.mxu0 0
      %1511 = vmatpush2.bf16.msra.mxu0 0
      %1512 = vmatprep.subr.bf16.mxu0 0
      %1513 = vmatpush2.bf16.msra.mxu0 0
      %1514 = vmatprep.mubr.bf16.mxu0 0
      %1515 = vmatmul.mubr.bf16.gmra.mxu0 %v1480
      %v1516 = vpop.f32.mrf.mxu0
      %v1517 = vadd.f32 %v1465, %v1516
      %v1518 = vpop.f32.mrf.mxu0
      %v1519 = vpop.f32.mrf.mxu0
      %v1520 = vpop.f32.mrf.mxu0
      %1521 = vdwg.mxu0
      %1523 = vrot.lane.b32.xlu0 %v1517, 32
      %v1524 = vpop.permute.xlu0 %1523
      %v1526 = vadd.f32 %v1276, %v1524
      %v1527 = vmul.f32 %v1526, %v840
      %v1528 = vpack.c.bf16 %v1527, %v1527
      %v1529 = vld [vmem:[%s813] sm:$0xf]
      %v1530 = vld [vmem:[%s813 + $0x4] sm:$0xf]
      %v1531 = vld [vmem:[%s813 + $0x8] sm:$0xf]
      %v1532 = vld [vmem:[%s813 + $0xc] sm:$0xf]
      %v1533 = vld [vmem:[%s816] sm:$0x1]
      %v1535 = vlaneseq
      %v1536 = vshrl.u32 %v1535, 7
      %v1537 = vsub.s32 0, %v1536
      %v1538 = vrot.slane %v1533, %v1537
      %1541 = vrot.lane.b32.xlu0 %v1528, 96
      %v1542 = vpop.permute.xlu0 %1541
      %v1547 = vunpack.c.l.b16 %v1529
      %v1548 = vunpack.c.l.b16 %v1530
      %v1549 = vunpack.c.l.b16 %v1531
      %v1550 = vunpack.c.l.b16 %v1532
      %v1551 = vpack.c.b16 %v1548, %v1547
      %v1552 = vpack.c.b16 %v1550, %v1549
      %v1556 = vsel %vm1038, %v1542, 0
      %1558 = vmatprep.subr.bf16.mxu0 0
      %1559 = vmatpush1.bf16.msra.mxu0 0
      %1560 = vmatprep.subr.bf16.mxu0 0
      %1561 = vmatpush1.bf16.msra.mxu0 0
      %1562 = vmatprep.subr.bf16.mxu0 0
      %1563 = vmatpush1.bf16.msra.mxu0 0
      %1564 = vmatprep.subr.bf16.mxu0 0
      %1565 = vmatpush1.bf16.msra.mxu0 0
      %1566 = vmatprep.subr.bf16.mxu0 0
      %1567 = vmatpush1.bf16.msra.mxu0 0
      %1568 = vmatprep.subr.bf16.mxu0 0
      %1569 = vmatpush1.bf16.msra.mxu0 0
      %1570 = vmatprep.subr.bf16.mxu0 0
      %1571 = vmatpush1.bf16.msra.mxu0 %v1552
      %1572 = vmatprep.subr.bf16.mxu0 0
      %1573 = vmatpush1.bf16.msra.mxu0 %v1551
      %1574 = vmatprep.subr.bf16.mxu0 0
      %1575 = vmatpush2.bf16.msra.mxu0 0
      %1576 = vmatprep.subr.bf16.mxu0 0
      %1577 = vmatpush2.bf16.msra.mxu0 0
      %1578 = vmatprep.subr.bf16.mxu0 0
      %1579 = vmatpush2.bf16.msra.mxu0 0
      %1580 = vmatprep.subr.bf16.mxu0 0
      %1581 = vmatpush2.bf16.msra.mxu0 0
      %1582 = vmatprep.subr.bf16.mxu0 0
      %1583 = vmatpush2.bf16.msra.mxu0 0
      %1584 = vmatprep.subr.bf16.mxu0 0
      %1585 = vmatpush2.bf16.msra.mxu0 0
      %1586 = vmatprep.subr.bf16.mxu0 0
      %1587 = vmatpush2.bf16.msra.mxu0 0
      %1588 = vmatprep.subr.bf16.mxu0 0
      %1589 = vmatpush2.bf16.msra.mxu0 0
      %1590 = vmatprep.mubr.bf16.mxu0 0
      %1591 = vmatmul.mubr.bf16.gmra.mxu0 %v1556
      %v1592 = vpop.f32.mrf.mxu0
      %v1593 = vadd.f32 %v1538, %v1592
      %v1594 = vpop.f32.mrf.mxu0
      %v1595 = vpop.f32.mrf.mxu0
      %v1596 = vpop.f32.mrf.mxu0
      %1597 = vdwg.mxu0
      %v1598 = vmul.f32 %v1593, 1.442695
      %v1599 = vpow.pop %v1598
      %v1600 = vmul.f32 %v1599, %v925
      %1602 = vrot.lane.b32.xlu0 %v1600, 120
      %v1603 = vpop.permute.xlu0 %1602
      %v1605 = vadd.f32 %v1593, %v1603
      %v1606 = vmul.f32 %v1605, %v840
      %1608 = vrot.lane.b32.xlu0 %v1606, 8
      %v1609 = vpop.permute.xlu0 %1608
      %v1611 = vsel %vm935, %v925, %v1609
      %1612 = vst.msk [vmem:[%s820] sm:$0xff] %vm851, %v1611
      %v1613 = vld [vmem:[%s823] sm:$0x1]
      %v1614 = vmul.f32 %v1593, %v840
      %1616 = vrot.lane.b32.xlu0 %v1614, 120
      %v1617 = vpop.permute.xlu0 %1616
      %v1619 = vsel %vm935, %v1617, 0.0
      %1620 = vadd.xlane.f32.xlu0 %v1619
      %v1621 = vpop.xlane.xlu0 %1620
      %v1622 = vrot.slane %v1621, 4
      %v1623 = vadd.f32 %v1621, %v1622
      %v1624 = vrot.slane %v1623, 2
      %v1625 = vadd.f32 %v1623, %v1624
      %v1626 = vrot.slane %v1625, 1
      %v1627 = vadd.f32 %v1625, %v1626
      %s1628 = vtos %v1627
      %v1629 = vstv %s1628
      %v1630 = vadd.f32 %v1613, %v1629
      %vm1631 = vcmask 0
      %1632 = vst.msk [vmem:[%s823] sm:$0x1] %vm1631, %v1630
      %p1633 = scmp.lt.s32.totalorder %s40, 1
      %s1634 = scalar_select %p1633, %s40, 1
      %s1635 = smul.addr %s1634, 8
      %s1636 = scalar_lea.vmem %s17, %s1635
      %p1637 = scmp.lt.s32.totalorder %s40, 1
      %s1638 = scalar_select %p1637, %s40, 1
      %s1639 = scalar_lea.vmem %s18, %s1638
      // Predicated region
      $region89: #{_lambda_.1} parent=83 // pred_check
        %p1640 = pneg %p482
      $region90: #{_lambda_.1} parent=83 // pred_check_branch
        %1642 = sbr.rel (%p1640) target = $region92
      $region91: #{_lambda_.1} parent=83 // pred_region
        _
      $region92: #{_lambda_.1} parent=83 // pred_fallthru
        _
      // Predicated region
      $region93: #{_lambda_.1} parent=83 // pred_check
        %p1643 = pneg %p508
      $region94: #{_lambda_.1} parent=83 // pred_check_branch
        %1645 = sbr.rel (%p1643) target = $region96
      $region95: #{_lambda_.1} parent=83 // pred_region
        _
      $region96: #{_lambda_.1} parent=83 // pred_fallthru
        _
    $region84: #{_lambda_.1} parent=5 // pred_fallthru
      _
    %p1646 = scmp.le.s32.totalorder 2, %s31
    // Predicated region
    $region97: #{_lambda_.1} parent=5 // pred_check
      %p1647 = pneg %p1646
    $region98: #{_lambda_.1} parent=5 // pred_check_branch
      %1649 = sbr.rel (%p1647) target = $region100
    $region99: #{_lambda_.1} parent=5 // pred_region
      %s1650 = ssub.s32 %s31, 2
      // Predicated region
      $region101: #{_lambda_.1} parent=99 // pred_check
        %p1651 = pneg %p488
      $region102: #{_lambda_.1} parent=99 // pred_check_branch
        %1653 = sbr.rel (%p1651) target = $region104
      $region103: #{_lambda_.1} parent=99 // pred_region
        %p1654 = scmp.lt.s32.totalorder %s42, 1
        %s1655 = scalar_select %p1654, %s42, 1
        %s1656 = smul.addr %s1655, 8
        %s1657 = scalar_lea.vmem %s17, %s1656
      $region104: #{_lambda_.1} parent=99 // pred_fallthru
        _
      // Predicated region
      $region105: #{_lambda_.1} parent=99 // pred_check
        %p1658 = pneg %p514
      $region106: #{_lambda_.1} parent=99 // pred_check_branch
        %1660 = sbr.rel (%p1658) target = $region108
      $region107: #{_lambda_.1} parent=99 // pred_region
        %p1661 = scmp.lt.s32.totalorder %s42, 1
        %s1662 = scalar_select %p1661, %s42, 1
        %s1663 = scalar_lea.vmem %s18, %s1662
      $region108: #{_lambda_.1} parent=99 // pred_fallthru
        _
    $region100: #{_lambda_.1} parent=5 // pred_fallthru
      _
  $region6: #{_lambda_.1} parent=0 // loop_footer
    %s35 = sadd.s32 1, %s31
  $region7: #{_lambda_.1} parent=0 // loop_footer_branch
    %30 = sbr.rel target = $region3
  $region8: #{_lambda_.1} parent=0 // loop_exit
    _

</llo_original>
